<compile_context>
chip_gen: v6e
topology: v6e:2x2x1
jax: 0.10.0
libtpu: 0.0.40
codegen_flags: <defaults>
</compile_context>

<pallas_src>
import math
import numpy as np
import jax
import jax.numpy as jnp
from jax.experimental import pallas as pl
from jax.experimental.pallas import tpu as pltpu


# ----------------------------------------------------------------------------- kernel ----
def _make_level_kernel(H_l, W_l, scale, TR):
    """Per-level kernel; level geometry (H_l, W_l, 1/stride) is baked in as constants."""
    f32 = jnp.float32
    H_f = float(H_l)
    W_f = float(W_l)

    def kernel(bidx_ref, roi_ref, samp_ref, rowcol_ref, grp_ref, feat_ref, out_ref):
        tile = pl.program_id(0)

        # grid-invariant constants (host precomputed, read once per grid step)
        xx_n = samp_ref[0:1, :]          # (1, S)  normalized in-box x offsets
        yy_n = samp_ref[1:2, :]          # (1, S)  normalized in-box y offsets
        hq = rowcol_ref[:, 0:1]          # (HW, 1) row index of flat cell q
        wq = rowcol_ref[:, 1:2]          # (HW, 1) col index of flat cell q

        @pl.loop(0, TR)
        def _(ri):
            r = tile * TR + ri           # global roi index
            base = r * 8
            b = bidx_ref[r]              # batch index (int32, SMEM)
            cx = roi_ref[base + 1]
            cy = roi_ref[base + 2]
            rw = roi_ref[base + 3]
            rh = roi_ref[base + 4]
            ct = roi_ref[base + 5]       # cos(theta)
            st = roi_ref[base + 6]       # sin(theta)

            roi_w = jnp.maximum(rw * scale, 1.0)
            roi_h = jnp.maximum(rh * scale, 1.0)

            # rotated sample coordinates on this level's grid, (1, S)
            xx = xx_n * roi_w
            yy = yy_n * roi_h
            x = xx * ct - yy * st + cx * scale
            y = xx * st + yy * ct + cy * scale

            valid = ((y >= -1.0) & (y <= H_f) & (x >= -1.0) & (x <= W_f)).astype(f32)
            yc = jnp.clip(y, 0.0, H_f - 1.0)
            xc = jnp.clip(x, 0.0, W_f - 1.0)

            # separable bilinear ("tent") weights over the flattened spatial grid, (HW, S)
            wgt = (jnp.maximum(0.0, 1.0 - jnp.abs(yc - hq))
                   * jnp.maximum(0.0, 1.0 - jnp.abs(xc - wq))
                   * valid)

            # (C, HW) @ (HW, S) on the MXU -- deep contraction dim, default precision,
            # f32 accumulation.
            fc = feat_ref[b]                                           # (C, HW), VMEM
            acc = jnp.dot(fc, wgt, preferred_element_type=f32)         # (C, S)
            # average the G samples of each bin + pad to 128 lanes: (C, S) @ (S, Ppad)
            pooled = jnp.dot(acc, grp_ref[...],
                             preferred_element_type=f32)               # (C, Ppad)
            out_ref[ri] = pooled

    return kernel


# ----------------------------------------------------------------------------- wrapper ---
def arbox_multi_roi_extract(feats, rois, *, out_size=4, featmap_strides=(4, 8),
                            ratio_max=5.0, sample_num=2, roi_tile=4):
    """feats: list of (N, C, H_l, W_l) arrays (NCHW).  rois: (R, 6) [b, cx, cy, w, h, theta]."""
    rois_np = np.asarray(rois, np.float32)
    L = len(feats)
    assert L == len(featmap_strides)
    N, C = int(feats[0].shape[0]), int(feats[0].shape[1])
    R = int(rois_np.shape[0])

    # ---- get_poolwh (host-side; output shapes must be static) ----
    if L == 1:
        out_h = out_w = int(out_size)
    else:
        ratios = rois_np[:, 3] / rois_np[:, 4]
        assert float(ratios.min()) >= 1.0
        ratio = min(float(np.ceil(ratios).max()), float(ratio_max))
        out_h = int(out_size)
        out_w = int(ratio * out_size)

    gy = gx = int(sample_num)
    G = gy * gx
    P = out_h * out_w
    Ppad = ((P + 127) // 128) * 128          # lane-dense output stores
    S = P * G                                # samples per roi

    # ---- ROI tiling (amortizes per-grid-step overhead; keeps a parallel grid axis) ----
    TR = int(roi_tile)
    R_pad = ((R + TR - 1) // TR) * TR
    rois_p = rois_np
    if R_pad > R:
        rois_p = np.concatenate([rois_np, np.repeat(rois_np[:1], R_pad - R, axis=0)], 0)

    bidx = jnp.asarray(rois_p[:, 0].astype(np.int32))                  # (R_pad,) SMEM
    roi_tab = np.zeros((R_pad, 8), np.float32)
    roi_tab[:, 0] = rois_p[:, 0]
    roi_tab[:, 1:5] = rois_p[:, 1:5]
    roi_tab[:, 5] = np.cos(rois_p[:, 5])
    roi_tab[:, 6] = np.sin(rois_p[:, 5])
    roi_flat = jnp.asarray(roi_tab.reshape(-1))                        # 1-D SMEM, no pad blowup

    # ---- grid-invariant constants, precomputed once on host ----
    s_idx = np.arange(S)
    ix = s_idx % gx
    iy = (s_idx // gx) % gy
    pw = (s_idx // G) % out_w
    ph = s_idx // (G * out_w)
    xx_n = (pw + (ix + 0.5) / gx) / out_w - 0.5
    yy_n = (ph + (iy + 0.5) / gy) / out_h - 0.5
    samp = jnp.asarray(np.stack([xx_n, yy_n]).astype(np.float32))      # (2, S)

    grp = np.zeros((S, Ppad), np.float32)                              # bin averaging
    grp[s_idx, s_idx // G] = 1.0 / G
    grp = jnp.asarray(grp)                                             # (S, Ppad)

    outs = []
    for f, stride in zip(feats, featmap_strides):
        H_l, W_l = int(f.shape[2]), int(f.shape[3])
        HW = H_l * W_l
        q = np.arange(HW)
        rowcol = jnp.asarray(np.stack([q // W_l, q % W_l], 1).astype(np.float32))  # (HW, 2)
        feat_flat = jnp.asarray(f, jnp.float32).reshape(N, C, HW)

        kernel = _make_level_kernel(H_l, W_l, 1.0 / float(stride), TR)

        out_l = pl.pallas_call(
            kernel,
            out_shape=jax.ShapeDtypeStruct((R_pad, C, Ppad), jnp.float32),
            grid=(R_pad // TR,),
            in_specs=[
                pl.BlockSpec(memory_space=pltpu.MemorySpace.SMEM),       # bidx   (R_pad,)
                pl.BlockSpec(memory_space=pltpu.MemorySpace.SMEM),       # rois   (R_pad*8,)
                pl.BlockSpec((2, S), lambda i: (0, 0)),                  # samp   (constant)
                pl.BlockSpec((HW, 2), lambda i: (0, 0)),                 # rowcol (constant)
                pl.BlockSpec((S, Ppad), lambda i: (0, 0)),               # grp    (constant)
                pl.BlockSpec((N, C, HW), lambda i: (0, 0, 0)),           # feat   (resident)
            ],
            out_specs=pl.BlockSpec((TR, C, Ppad), lambda i: (i, 0, 0)),
            compiler_params=pltpu.CompilerParams(
                dimension_semantics=("parallel",),
                vmem_limit_bytes=32 * 1024 * 1024),
        )(bidx, roi_flat, samp, rowcol, grp, feat_flat)
        outs.append(out_l)

    out = outs[0]
    for o in outs[1:]:
        out = jnp.maximum(out, o)                # cross-level max (tiny, done in XLA)

    return out[:R, :, :P].reshape(R, C, out_h, out_w)


# ------------------------------------------------------------------------ numpy reference
def _roi_align_rotated_ref(feat, rois, out_h, out_w, spatial_scale, sample_num):
    feat = np.asarray(feat, np.float32)
    rois = np.asarray(rois, np.float32)
    N, C, H, W = feat.shape
    R = rois.shape[0]
    gy = gx = sample_num
    out = np.zeros((R, C, out_h, out_w), np.float32)
    for r in range(R):
        b = int(rois[r, 0])
        cx, cy, w, h, th = [float(v) for v in rois[r, 1:6]]
        cw, ch = cx * spatial_scale, cy * spatial_scale
        rw = max(w * spatial_scale, 1.0)
        rh = max(h * spatial_scale, 1.0)
        bin_w, bin_h = rw / out_w, rh / out_h
        sw, sh = -rw / 2.0, -rh / 2.0
        ct, st = math.cos(th), math.sin(th)
        for ph in range(out_h):
            for pw_ in range(out_w):
                acc = np.zeros(C, np.float32)
                for iy in range(gy):
                    for ix in range(gx):
                        yy = sh + (ph + (iy + 0.5) / gy) * bin_h
                        xx = sw + (pw_ + (ix + 0.5) / gx) * bin_w
                        x = xx * ct - yy * st + cw
                        y = xx * st + yy * ct + ch
                        if y < -1.0 or y > H or x < -1.0 or x > W:
                            continue
                        yc = min(max(y, 0.0), H - 1.0)
                        xc = min(max(x, 0.0), W - 1.0)
                        wy = np.maximum(0.0, 1.0 - np.abs(yc - np.arange(H)))
                        wx = np.maximum(0.0, 1.0 - np.abs(xc - np.arange(W)))
                        acc += np.einsum('chw,h,w->c', feat[b], wy, wx).astype(np.float32)
                out[r, :, ph, pw_] = acc / (gy * gx)
    return out


def _forward_ref(feats, rois, out_size, strides, ratio_max, sample_num):
    rois_np = np.asarray(rois, np.float32)
    L = len(feats)
    if L == 1:
        out_h = out_w = out_size
    else:
        ratios = rois_np[:, 3] / rois_np[:, 4]
        ratio = min(float(np.ceil(ratios).max()), ratio_max)
        out_h, out_w = out_size, int(ratio * out_size)
    per = [_roi_align_rotated_ref(f, rois_np, out_h, out_w, 1.0 / s, sample_num)
           for f, s in zip(feats, strides)]
    out = per[0]
    for i in range(1, L):
        out = np.maximum(out, per[i])
    return out


# ----------------------------------------------------------------------------- main ------
if __name__ == "__main__":
    key = jax.random.PRNGKey(0)
    k1, k2, k3, k4, k5 = jax.random.split(key, 5)

    N, C = 2, 4
    strides = (4, 8)
    feat0 = jax.random.normal(k1, (N, C, 16, 16), jnp.float32)   # level 0 (stride 4)
    feat1 = jax.random.normal(k2, (N, C, 8, 8), jnp.float32)     # level 1 (stride 8)
    feats = [feat0, feat1]

    R = 6
    batch = jax.random.randint(k3, (R,), 0, N).astype(jnp.float32)
    h = jax.random.uniform(k4, (R,), minval=8.0, maxval=16.0)
    ratio = jax.random.uniform(k5, (R,), minval=1.0, maxval=3.0)
    w = h * ratio                                               # guarantees w/h >= 1
    cx = jnp.linspace(16.0, 48.0, R)
    cy = jnp.linspace(20.0, 44.0, R)
    theta = jnp.linspace(-0.6, 0.6, R)
    rois = jnp.stack([batch, cx, cy, w, h, theta], axis=1)      # (R, 6)

    out = arbox_multi_roi_extract(feats, rois, out_size=4, featmap_strides=strides,
                                  ratio_max=5.0, sample_num=2, roi_tile=4)
    out = jax.block_until_ready(out)

    ref = _forward_ref([np.asarray(f) for f in feats], np.asarray(rois),
                       out_size=4, strides=strides, ratio_max=5.0, sample_num=2)
    assert out.shape == ref.shape, (out.shape, ref.shape)
    np.testing.assert_allclose(np.asarray(out), ref, rtol=1e-2, atol=1e-2)
    print("KERNEL_OK")
</pallas_src>

<mosaic_0001>
module attributes {stable_mosaic.version = 11 : i64} {
  func.func @kernel(%arg0: i32, %arg1: memref<8xi32, #tpu.memory_space<smem>>, %arg2: memref<64xf32, #tpu.memory_space<smem>>, %arg3: memref<2x192xf32, #tpu.memory_space<vmem>>, %arg4: memref<256x2xf32, #tpu.memory_space<vmem>>, %arg5: memref<192x128xf32, #tpu.memory_space<vmem>>, %arg6: memref<2x4x256xf32, #tpu.memory_space<vmem>>, %arg7: memref<4x4x128xf32, #tpu.memory_space<vmem>>) attributes {dimension_semantics = [#tpu.dimension_semantics<parallel>], iteration_bounds = array<i64: 2>, scalar_prefetch = 0 : i64, scratch_operands = 0 : i64, tpu.core_type = #tpu.core_type<tc>, window_params = [{transform_indices = @transform_0, window_bounds = array<i64: 8>}, {transform_indices = @transform_1, window_bounds = array<i64: 64>}, {pipeline_mode = #tpu.pipeline_mode<synchronous>, transform_indices = @transform_2, window_bounds = array<i64: 2, 192>}, {pipeline_mode = #tpu.pipeline_mode<synchronous>, transform_indices = @transform_3, window_bounds = array<i64: 256, 2>}, {pipeline_mode = #tpu.pipeline_mode<synchronous>, transform_indices = @transform_4, window_bounds = array<i64: 192, 128>}, {pipeline_mode = #tpu.pipeline_mode<synchronous>, transform_indices = @transform_5, window_bounds = array<i64: 2, 4, 256>}, {transform_indices = @transform_6, window_bounds = array<i64: 4, 4, 128>}]} {
    %c0 = arith.constant 0 : index
    %c0_0 = arith.constant 0 : index
    %0 = vector.load %arg3[%c0, %c0_0] : memref<2x192xf32, #tpu.memory_space<vmem>>, vector<1x192xf32>
    %c1 = arith.constant 1 : index
    %c0_1 = arith.constant 0 : index
    %1 = vector.load %arg3[%c1, %c0_1] : memref<2x192xf32, #tpu.memory_space<vmem>>, vector<1x192xf32>
    %c0_2 = arith.constant 0 : index
    %c0_3 = arith.constant 0 : index
    %2 = vector.load %arg4[%c0_2, %c0_3] : memref<256x2xf32, #tpu.memory_space<vmem>>, vector<256x1xf32>
    %c0_4 = arith.constant 0 : index
    %c1_5 = arith.constant 1 : index
    %3 = vector.load %arg4[%c0_4, %c1_5] : memref<256x2xf32, #tpu.memory_space<vmem>>, vector<256x1xf32>
    %c0_i32 = arith.constant 0 : i32
    %c4_i32 = arith.constant 4 : i32
    %4 = arith.addi %c0_i32, %c4_i32 : i32
    %c1_i32 = arith.constant 1 : i32
    scf.for %arg8 = %c0_i32 to %4 step %c1_i32  : i32 {
      %c1_i32_7 = arith.constant 1 : i32
      %5 = arith.muli %arg8, %c1_i32_7 : i32
      %c0_i32_8 = arith.constant 0 : i32
      %6 = arith.addi %c0_i32_8, %5 : i32
      %c4_i32_9 = arith.constant 4 : i32
      %7 = arith.muli %arg0, %c4_i32_9 : i32
      %8 = arith.addi %7, %6 : i32
      %c8_i32 = arith.constant 8 : i32
      %9 = arith.muli %8, %c8_i32 : i32
      %10 = arith.index_cast %8 : i32 to index
      %11 = memref.load %arg1[%10] : memref<8xi32, #tpu.memory_space<smem>>
      %c1_i32_10 = arith.constant 1 : i32
      %12 = arith.addi %9, %c1_i32_10 : i32
      %13 = arith.index_cast %12 : i32 to index
      %14 = memref.load %arg2[%13] : memref<64xf32, #tpu.memory_space<smem>>
      %c2_i32 = arith.constant 2 : i32
      %15 = arith.addi %9, %c2_i32 : i32
      %16 = arith.index_cast %15 : i32 to index
      %17 = memref.load %arg2[%16] : memref<64xf32, #tpu.memory_space<smem>>
      %c3_i32 = arith.constant 3 : i32
      %18 = arith.addi %9, %c3_i32 : i32
      %19 = arith.index_cast %18 : i32 to index
      %20 = memref.load %arg2[%19] : memref<64xf32, #tpu.memory_space<smem>>
      %c4_i32_11 = arith.constant 4 : i32
      %21 = arith.addi %9, %c4_i32_11 : i32
      %22 = arith.index_cast %21 : i32 to index
      %23 = memref.load %arg2[%22] : memref<64xf32, #tpu.memory_space<smem>>
      %c5_i32 = arith.constant 5 : i32
      %24 = arith.addi %9, %c5_i32 : i32
      %25 = arith.index_cast %24 : i32 to index
      %26 = memref.load %arg2[%25] : memref<64xf32, #tpu.memory_space<smem>>
      %c6_i32 = arith.constant 6 : i32
      %27 = arith.addi %9, %c6_i32 : i32
      %28 = arith.index_cast %27 : i32 to index
      %29 = memref.load %arg2[%28] : memref<64xf32, #tpu.memory_space<smem>>
      %cst = arith.constant 2.500000e-01 : f32
      %30 = arith.mulf %20, %cst : f32
      %cst_12 = arith.constant 1.000000e+00 : f32
      %31 = arith.maximumf %30, %cst_12 : f32
      %cst_13 = arith.constant 2.500000e-01 : f32
      %32 = arith.mulf %23, %cst_13 : f32
      %cst_14 = arith.constant 1.000000e+00 : f32
      %33 = arith.maximumf %32, %cst_14 : f32
      %34 = vector.broadcast %31 : f32 to vector<1x192xf32>
      %35 = arith.mulf %0, %34 : vector<1x192xf32>
      %36 = vector.broadcast %33 : f32 to vector<1x192xf32>
      %37 = arith.mulf %1, %36 : vector<1x192xf32>
      %38 = vector.broadcast %26 : f32 to vector<1x192xf32>
      %39 = arith.mulf %35, %38 : vector<1x192xf32>
      %40 = vector.broadcast %29 : f32 to vector<1x192xf32>
      %41 = arith.mulf %37, %40 : vector<1x192xf32>
      %42 = arith.subf %39, %41 : vector<1x192xf32>
      %cst_15 = arith.constant 2.500000e-01 : f32
      %43 = arith.mulf %14, %cst_15 : f32
      %44 = vector.broadcast %43 : f32 to vector<1x192xf32>
      %45 = arith.addf %42, %44 : vector<1x192xf32>
      %46 = vector.broadcast %29 : f32 to vector<1x192xf32>
      %47 = arith.mulf %35, %46 : vector<1x192xf32>
      %48 = vector.broadcast %26 : f32 to vector<1x192xf32>
      %49 = arith.mulf %37, %48 : vector<1x192xf32>
      %50 = arith.addf %47, %49 : vector<1x192xf32>
      %cst_16 = arith.constant 2.500000e-01 : f32
      %51 = arith.mulf %17, %cst_16 : f32
      %52 = vector.broadcast %51 : f32 to vector<1x192xf32>
      %53 = arith.addf %50, %52 : vector<1x192xf32>
      %cst_17 = arith.constant -1.000000e+00 : f32
      %54 = vector.broadcast %cst_17 : f32 to vector<1x192xf32>
      %55 = arith.cmpf oge, %53, %54 : vector<1x192xf32>
      %cst_18 = arith.constant 1.600000e+01 : f32
      %56 = vector.broadcast %cst_18 : f32 to vector<1x192xf32>
      %57 = arith.cmpf ole, %53, %56 : vector<1x192xf32>
      %58 = arith.andi %55, %57 : vector<1x192xi1>
      %cst_19 = arith.constant -1.000000e+00 : f32
      %59 = vector.broadcast %cst_19 : f32 to vector<1x192xf32>
      %60 = arith.cmpf oge, %45, %59 : vector<1x192xf32>
      %61 = arith.andi %58, %60 : vector<1x192xi1>
      %cst_20 = arith.constant 1.600000e+01 : f32
      %62 = vector.broadcast %cst_20 : f32 to vector<1x192xf32>
      %63 = arith.cmpf ole, %45, %62 : vector<1x192xf32>
      %64 = arith.andi %61, %63 : vector<1x192xi1>
      %65 = arith.extui %64 : vector<1x192xi1> to vector<1x192xi32>
      %66 = arith.sitofp %65 : vector<1x192xi32> to vector<1x192xf32>
      %cst_21 = arith.constant 0.000000e+00 : f32
      %cst_22 = arith.constant 1.500000e+01 : f32
      %67 = vector.broadcast %cst_21 : f32 to vector<1x192xf32>
      %68 = arith.maximumf %67, %53 : vector<1x192xf32>
      %69 = vector.broadcast %cst_22 : f32 to vector<1x192xf32>
      %70 = arith.minimumf %69, %68 : vector<1x192xf32>
      %cst_23 = arith.constant 0.000000e+00 : f32
      %cst_24 = arith.constant 1.500000e+01 : f32
      %71 = vector.broadcast %cst_23 : f32 to vector<1x192xf32>
      %72 = arith.maximumf %71, %45 : vector<1x192xf32>
      %73 = vector.broadcast %cst_24 : f32 to vector<1x192xf32>
      %74 = arith.minimumf %73, %72 : vector<1x192xf32>
      %75 = vector.broadcast %70 : vector<1x192xf32> to vector<256x192xf32>
      %76 = vector.broadcast %2 : vector<256x1xf32> to vector<256x192xf32>
      %77 = arith.subf %75, %76 : vector<256x192xf32>
      %78 = math.absf %77 : vector<256x192xf32>
      %cst_25 = arith.constant 1.000000e+00 : f32
      %79 = vector.broadcast %cst_25 : f32 to vector<256x192xf32>
      %80 = arith.subf %79, %78 : vector<256x192xf32>
      %cst_26 = arith.constant 0.000000e+00 : f32
      %81 = vector.broadcast %cst_26 : f32 to vector<256x192xf32>
      %82 = arith.maximumf %81, %80 : vector<256x192xf32>
      %83 = vector.broadcast %74 : vector<1x192xf32> to vector<256x192xf32>
      %84 = vector.broadcast %3 : vector<256x1xf32> to vector<256x192xf32>
      %85 = arith.subf %83, %84 : vector<256x192xf32>
      %86 = math.absf %85 : vector<256x192xf32>
      %cst_27 = arith.constant 1.000000e+00 : f32
      %87 = vector.broadcast %cst_27 : f32 to vector<256x192xf32>
      %88 = arith.subf %87, %86 : vector<256x192xf32>
      %cst_28 = arith.constant 0.000000e+00 : f32
      %89 = vector.broadcast %cst_28 : f32 to vector<256x192xf32>
      %90 = arith.maximumf %89, %88 : vector<256x192xf32>
      %91 = arith.mulf %82, %90 : vector<256x192xf32>
      %92 = vector.broadcast %66 : vector<1x192xf32> to vector<256x192xf32>
      %93 = arith.mulf %91, %92 : vector<256x192xf32>
      %94 = arith.index_cast %11 : i32 to index
      %c0_29 = arith.constant 0 : index
      %c0_30 = arith.constant 0 : index
      %95 = vector.load %arg6[%94, %c0_29, %c0_30] : memref<2x4x256xf32, #tpu.memory_space<vmem>>, vector<1x4x256xf32>
      %96 = vector.shape_cast %95 : vector<1x4x256xf32> to vector<4x256xf32>
      %cst_31 = arith.constant dense<0.000000e+00> : vector<4x192xf32>
      %97 = tpu.matmul %96, %93, %cst_31 {dimension_numbers = #tpu.dot_dimension_numbers<[1], [0], [0], [1], [0, 0, 1, 1], [], []>} : vector<4x256xf32>, vector<256x192xf32>, vector<4x192xf32> -> vector<4x192xf32>
      %c0_32 = arith.constant 0 : index
      %c0_33 = arith.constant 0 : index
      %98 = vector.load %arg5[%c0_32, %c0_33] : memref<192x128xf32, #tpu.memory_space<vmem>>, vector<192x128xf32>
      %cst_34 = arith.constant dense<0.000000e+00> : vector<4x128xf32>
      %99 = tpu.matmul %97, %98, %cst_34 {dimension_numbers = #tpu.dot_dimension_numbers<[1], [0], [0], [1], [0, 0, 1, 1], [], []>} : vector<4x192xf32>, vector<192x128xf32>, vector<4x128xf32> -> vector<4x128xf32>
      %100 = arith.index_cast %6 : i32 to index
      %c0_35 = arith.constant 0 : index
      %c0_36 = arith.constant 0 : index
      %101 = vector.load %arg7[%100, %c0_35, %c0_36] : memref<4x4x128xf32, #tpu.memory_space<vmem>>, vector<1x4x128xf32>
      %102 = vector.shape_cast %101 : vector<1x4x128xf32> to vector<4x128xf32>
      %103 = vector.shape_cast %99 : vector<4x128xf32> to vector<1x4x128xf32>
      tpu.vector_store %arg7[%100, %c0_35, %c0_36], %103 {strides = array<i32>} : memref<4x4x128xf32, #tpu.memory_space<vmem>>, vector<1x4x128xf32>,
    }
    %c4_i32_6 = arith.constant 4 : i32
    return
  }
  func.func @transform_0(%arg0: i32) -> i32 {
    %c0_i32 = arith.constant 0 : i32
    %c0_i32_0 = arith.constant 0 : i32
    return %c0_i32 : i32
  }
  func.func @transform_1(%arg0: i32) -> i32 {
    %c0_i32 = arith.constant 0 : i32
    %c0_i32_0 = arith.constant 0 : i32
    return %c0_i32 : i32
  }
  func.func @transform_2(%arg0: i32) -> (i32, i32) {
    %c0_i32 = arith.constant 0 : i32
    %c0_i32_0 = arith.constant 0 : i32
    %c0_i32_1 = arith.constant 0 : i32
    return %c0_i32, %c0_i32_0 : i32, i32
  }
  func.func @transform_3(%arg0: i32) -> (i32, i32) {
    %c0_i32 = arith.constant 0 : i32
    %c0_i32_0 = arith.constant 0 : i32
    %c0_i32_1 = arith.constant 0 : i32
    return %c0_i32, %c0_i32_0 : i32, i32
  }
  func.func @transform_4(%arg0: i32) -> (i32, i32) {
    %c0_i32 = arith.constant 0 : i32
    %c0_i32_0 = arith.constant 0 : i32
    %c0_i32_1 = arith.constant 0 : i32
    return %c0_i32, %c0_i32_0 : i32, i32
  }
  func.func @transform_5(%arg0: i32) -> (i32, i32, i32) {
    %c0_i32 = arith.constant 0 : i32
    %c0_i32_0 = arith.constant 0 : i32
    %c0_i32_1 = arith.constant 0 : i32
    %c0_i32_2 = arith.constant 0 : i32
    return %c0_i32, %c0_i32_0, %c0_i32_1 : i32, i32, i32
  }
  func.func @transform_6(%arg0: i32) -> (i32, i32, i32) {
    %c0_i32 = arith.constant 0 : i32
    %c0_i32_0 = arith.constant 0 : i32
    %c0_i32_1 = arith.constant 0 : i32
    return %arg0, %c0_i32, %c0_i32_0 : i32, i32, i32
  }
}

</mosaic_0001>

<llo_original>
// kernel: tpu_custom_call.1
$region0: #{tpu_custom_call.1}
  #allocation0 [shape = 'u32[]', space=smem, size = 0x4, offset = 0x4, fixed_abs, tag = 'smem constant byte address 0x4 - core index']
  #allocation1 [shape = 'u32[144,128]{1,0:T(1,128)}', space=vmem, size = 0x12000, scoped, tag = 'internal scratch']
  %s0 = inlined_call_operand.vmem [shape: s32[8], index: 0, kind: input, shape index: {}]
  %s1 = inlined_call_operand.vmem [shape: f32[64], index: 1, kind: input, shape index: {}]
  %s2 = inlined_call_operand.vmem [shape: f32[2,192], index: 2, kind: input, shape index: {}]
  %s3 = inlined_call_operand.vmem [shape: f32[256,2], index: 3, kind: input, shape index: {}]
  %s4 = inlined_call_operand.vmem [shape: f32[192,128], index: 4, kind: input, shape index: {}]
  %s5 = inlined_call_operand.vmem [shape: f32[2,4,256], index: 5, kind: input, shape index: {}]
  %s6 = inlined_call_operand.hbm [shape: f32[8,4,128], index: 6, kind: output, shape index: {}]
  %s7 = sld [smem:[#allocation0]]
  $region72: #{tpu_custom_call.1} parent=0
    _
  %s9 = ssub.s32 1, %s7
  %s10 = scalar_select 0, %s9, %s7
  $region1: #{tpu_custom_call.1} parent=0
    #allocation2 [shape = 'u8[512]{0}', space=smem, size = 0x200, scoped, tag = 'input window, operand 0, single buffered']
    #allocation3 [shape = 's32[2]{0}', space=sflag, size = 0x8, scoped, tag = 'scoped memory for tpu_custom_call.1']
    #allocation4 [shape = 's32[2]{0}', space=sflag, size = 0x8, scoped, tag = 'scoped memory for tpu_custom_call.1']
    #allocation5 [shape = 'u8[512]{0}', space=smem, size = 0x200, scoped, tag = 'input window, operand 1, single buffered']
    #allocation6 [shape = 's32[1]{0}', space=sflag, size = 0x4, scoped, tag = 'scoped memory for tpu_custom_call.1']
    #allocation7 [shape = 'u8[16384]{0}', space=vmem, size = 0x4000, scoped, tag = 'output window, operand 0']
    %11 = vsyncpa [#allocation4], 0
    %12 = vsyncpa [#allocation6], 0
    %13 = vsyncpa [#allocation3], 0
    %s14 = scalar_lea.sflag [#allocation3], 1
    %15 = vsyncpa %s14, 0
    loop: start=0, step=1, limit=4
    $region2: #{tpu_custom_call.1} parent=1 // loop_pre_header
      _
    $region3: #{tpu_custom_call.1} parent=1 // loop_header
      %s17 = sphi 0, %s21
      %p18 = scmp.ge.s32.totalorder %s17, 4
      %s25 = sphi 0, %s25
      %s27 = sphi 0, %s25
      %s28 = sphi 0, %s27
      %s42 = sphi 0, %s28
      %s46 = sphi 0, %s46
      %s48 = sphi 0, %s46
      %s49 = sphi 0, %s48
      %s63 = sphi 0, %s49
      %s67 = sphi 0, %s67
      %s69 = sphi 0, %s67
      %s70 = sphi 0, %s69
      %s84 = sphi 0, %s70
      %s88 = sphi 0, %s88
      %s90 = sphi 0, %s88
      %s91 = sphi 0, %s90
      %s105 = sphi 0, %s91
      %s109 = sphi 0, %s109
      %s111 = sphi 0, %s109
      %s112 = sphi 0, %s111
      %s126 = sphi 0, %s112
      %s130 = sphi 0, %s130
      %s132 = sphi 0, %s130
      %s133 = sphi 0, %s132
      %s147 = sphi 0, %s133
      %s153 = sphi 0, %s155
      %s156 = sphi 0, %s153
      %s157 = sphi 0, %s156
      %s173 = sphi 0, %s157
    $region4: #{tpu_custom_call.1} parent=1 // loop_header_branch
      %20 = sbr.rel (%p18) target = $region8
    $region5: #{tpu_custom_call.1} parent=1 // loop_body
      %s22 = ssub.s32 %s17, 1
      %s23 = ssub.s32 %s17, 2
      %s24 = sadd.s32 %s17, 1
      %s26 = sadd.s32 %s25, 1
      %p29 = scmp.eq.s32.totalorder %s17, 1
      %p30 = scmp.ne.s32.totalorder %s25, %s27
      %p31 = scmp.eq.s32.totalorder %s17, 0
      %p32 = por %p30, %p31
      %p33 = scmp.ne.s32.totalorder %s25, %s27
      %p34 = scmp.eq.s32.totalorder %s22, 1
      %p35 = por %p33, %p34
      %p36 = scmp.ne.s32.totalorder %s27, %s28
      %p37 = scmp.eq.s32.totalorder %s22, 0
      %p38 = por %p36, %p37
      %p39 = scmp.ne.s32.totalorder %s27, %s28
      %p40 = scmp.eq.s32.totalorder %s23, 1
      %p41 = por %p39, %p40
      %p43 = scmp.ne.s32.totalorder %s28, %s42
      %p44 = scmp.eq.s32.totalorder %s23, 0
      %p45 = por %p43, %p44
      %s47 = sadd.s32 %s46, 1
      %p50 = scmp.eq.s32.totalorder %s17, 1
      %p51 = scmp.ne.s32.totalorder %s46, %s48
      %p52 = scmp.eq.s32.totalorder %s17, 0
      %p53 = por %p51, %p52
      %p54 = scmp.ne.s32.totalorder %s46, %s48
      %p55 = scmp.eq.s32.totalorder %s22, 1
      %p56 = por %p54, %p55
      %p57 = scmp.ne.s32.totalorder %s48, %s49
      %p58 = scmp.eq.s32.totalorder %s22, 0
      %p59 = por %p57, %p58
      %p60 = scmp.ne.s32.totalorder %s48, %s49
      %p61 = scmp.eq.s32.totalorder %s23, 1
      %p62 = por %p60, %p61
      %p64 = scmp.ne.s32.totalorder %s49, %s63
      %p65 = scmp.eq.s32.totalorder %s23, 0
      %p66 = por %p64, %p65
      %s68 = sadd.s32 %s67, 1
      %p71 = scmp.eq.s32.totalorder %s17, 1
      %p72 = scmp.ne.s32.totalorder %s67, %s69
      %p73 = scmp.eq.s32.totalorder %s17, 0
      %p74 = por %p72, %p73
      %p75 = scmp.ne.s32.totalorder %s67, %s69
      %p76 = scmp.eq.s32.totalorder %s22, 1
      %p77 = por %p75, %p76
      %p78 = scmp.ne.s32.totalorder %s69, %s70
      %p79 = scmp.eq.s32.totalorder %s22, 0
      %p80 = por %p78, %p79
      %p81 = scmp.ne.s32.totalorder %s69, %s70
      %p82 = scmp.eq.s32.totalorder %s23, 1
      %p83 = por %p81, %p82
      %p85 = scmp.ne.s32.totalorder %s70, %s84
      %p86 = scmp.eq.s32.totalorder %s23, 0
      %p87 = por %p85, %p86
      %s89 = sadd.s32 %s88, 1
      %p92 = scmp.eq.s32.totalorder %s17, 1
      %p93 = scmp.ne.s32.totalorder %s88, %s90
      %p94 = scmp.eq.s32.totalorder %s17, 0
      %p95 = por %p93, %p94
      %p96 = scmp.ne.s32.totalorder %s88, %s90
      %p97 = scmp.eq.s32.totalorder %s22, 1
      %p98 = por %p96, %p97
      %p99 = scmp.ne.s32.totalorder %s90, %s91
      %p100 = scmp.eq.s32.totalorder %s22, 0
      %p101 = por %p99, %p100
      %p102 = scmp.ne.s32.totalorder %s90, %s91
      %p103 = scmp.eq.s32.totalorder %s23, 1
      %p104 = por %p102, %p103
      %p106 = scmp.ne.s32.totalorder %s91, %s105
      %p107 = scmp.eq.s32.totalorder %s23, 0
      %p108 = por %p106, %p107
      %s110 = sadd.s32 %s109, 1
      %p113 = scmp.eq.s32.totalorder %s17, 1
      %p114 = scmp.ne.s32.totalorder %s109, %s111
      %p115 = scmp.eq.s32.totalorder %s17, 0
      %p116 = por %p114, %p115
      %p117 = scmp.ne.s32.totalorder %s109, %s111
      %p118 = scmp.eq.s32.totalorder %s22, 1
      %p119 = por %p117, %p118
      %p120 = scmp.ne.s32.totalorder %s111, %s112
      %p121 = scmp.eq.s32.totalorder %s22, 0
      %p122 = por %p120, %p121
      %p123 = scmp.ne.s32.totalorder %s111, %s112
      %p124 = scmp.eq.s32.totalorder %s23, 1
      %p125 = por %p123, %p124
      %p127 = scmp.ne.s32.totalorder %s112, %s126
      %p128 = scmp.eq.s32.totalorder %s23, 0
      %p129 = por %p127, %p128
      %s131 = sadd.s32 %s130, 1
      %p134 = scmp.eq.s32.totalorder %s17, 1
      %p135 = scmp.ne.s32.totalorder %s130, %s132
      %p136 = scmp.eq.s32.totalorder %s17, 0
      %p137 = por %p135, %p136
      %p138 = scmp.ne.s32.totalorder %s130, %s132
      %p139 = scmp.eq.s32.totalorder %s22, 1
      %p140 = por %p138, %p139
      %p141 = scmp.ne.s32.totalorder %s132, %s133
      %p142 = scmp.eq.s32.totalorder %s22, 0
      %p143 = por %p141, %p142
      %p144 = scmp.ne.s32.totalorder %s132, %s133
      %p145 = scmp.eq.s32.totalorder %s23, 1
      %p146 = por %p144, %p145
      %p148 = scmp.ne.s32.totalorder %s133, %s147
      %p149 = scmp.eq.s32.totalorder %s23, 0
      %p150 = por %p148, %p149
      %s151 = ssub.s32 %s17, %s24
      %p152 = scmp.eq.s32.totalorder %s151, 0
      %s154 = sadd.s32 %s153, 1
      %s155 = scalar_select %p152, %s153, %s154
      %p158 = pneg %p152
      %p159 = scmp.eq.s32.totalorder %s17, 1
      %p160 = por %p158, %p159
      %p161 = scmp.ne.s32.totalorder %s153, %s156
      %p162 = scmp.eq.s32.totalorder %s17, 0
      %p163 = por %p161, %p162
      %p164 = scmp.ne.s32.totalorder %s153, %s156
      %p165 = scmp.eq.s32.totalorder %s22, 1
      %p166 = por %p164, %p165
      %p167 = scmp.ne.s32.totalorder %s156, %s157
      %p168 = scmp.eq.s32.totalorder %s22, 0
      %p169 = por %p167, %p168
      %p170 = scmp.ne.s32.totalorder %s156, %s157
      %p171 = scmp.eq.s32.totalorder %s23, 1
      %p172 = por %p170, %p171
      %p174 = scmp.ne.s32.totalorder %s157, %s173
      %p175 = scmp.eq.s32.totalorder %s23, 0
      %p176 = por %p174, %p175
      %p177 = scmp.le.s32.totalorder 1, %s17
      %p178 = scmp.lt.s32.totalorder %s17, 3
      %p179 = pnand %p177, %p178
      %p180 = pneg %p179
      // Predicated region
      $region9: #{tpu_custom_call.1} parent=5 // pred_check
        _
      $region10: #{tpu_custom_call.1} parent=5 // pred_check_branch
        %182 = sbr.rel (%p179) target = $region12
      $region11: #{tpu_custom_call.1} parent=5 // pred_region
        %s183 = ssub.s32 %s17, 1
        // Predicated region
        $region13: #{tpu_custom_call.1} parent=11 // pred_check
          %p184 = pneg %p38
        $region14: #{tpu_custom_call.1} parent=11 // pred_check_branch
          %186 = sbr.rel (%p184) target = $region16
        $region15: #{tpu_custom_call.1} parent=11 // pred_region
          %s188 = ssub.s32 16, 16
          %189 = vsyncadd [#allocation4], %s188
          %s191 = sshll.u32 %s0, 4
          %s192 = int_to_ptr.vmem [resolvable:$true] %s191
          %194 = dma.vmem_to_smem %s192, 16, [#allocation2], [#allocation4]
        $region16: #{tpu_custom_call.1} parent=11 // pred_fallthru
          _
        // Predicated region
        $region17: #{tpu_custom_call.1} parent=11 // pred_check
          %p195 = pneg %p59
        $region18: #{tpu_custom_call.1} parent=11 // pred_check_branch
          %197 = sbr.rel (%p195) target = $region20
        $region19: #{tpu_custom_call.1} parent=11 // pred_region
          %s199 = ssub.s32 16, 16
          %200 = vsyncadd [#allocation6], %s199
          %s202 = sshll.u32 %s1, 4
          %s203 = int_to_ptr.vmem [resolvable:$true] %s202
          %205 = dma.vmem_to_smem %s203, 16, [#allocation5], [#allocation6]
        $region20: #{tpu_custom_call.1} parent=11 // pred_fallthru
          _
        // Predicated region
        $region21: #{tpu_custom_call.1} parent=11 // pred_check
          %p206 = pneg %p80
        $region22: #{tpu_custom_call.1} parent=11 // pred_check_branch
          %208 = sbr.rel (%p206) target = $region24
        $region23: #{tpu_custom_call.1} parent=11 // pred_region
          _
        $region24: #{tpu_custom_call.1} parent=11 // pred_fallthru
          _
        // Predicated region
        $region25: #{tpu_custom_call.1} parent=11 // pred_check
          %p209 = pneg %p101
        $region26: #{tpu_custom_call.1} parent=11 // pred_check_branch
          %211 = sbr.rel (%p209) target = $region28
        $region27: #{tpu_custom_call.1} parent=11 // pred_region
          _
        $region28: #{tpu_custom_call.1} parent=11 // pred_fallthru
          _
        // Predicated region
        $region29: #{tpu_custom_call.1} parent=11 // pred_check
          %p212 = pneg %p122
        $region30: #{tpu_custom_call.1} parent=11 // pred_check_branch
          %214 = sbr.rel (%p212) target = $region32
        $region31: #{tpu_custom_call.1} parent=11 // pred_region
          _
        $region32: #{tpu_custom_call.1} parent=11 // pred_fallthru
          _
        // Predicated region
        $region33: #{tpu_custom_call.1} parent=11 // pred_check
          %p215 = pneg %p143
        $region34: #{tpu_custom_call.1} parent=11 // pred_check_branch
          %217 = sbr.rel (%p215) target = $region36
        $region35: #{tpu_custom_call.1} parent=11 // pred_region
          _
        $region36: #{tpu_custom_call.1} parent=11 // pred_fallthru
          _
      $region12: #{tpu_custom_call.1} parent=5 // pred_fallthru
        _
      %p218 = scmp.lt.s32.totalorder %s17, 2
      // Predicated region
      $region37: #{tpu_custom_call.1} parent=5 // pred_check
        %p219 = pneg %p218
      $region38: #{tpu_custom_call.1} parent=5 // pred_check_branch
        %221 = sbr.rel (%p219) target = $region40
      $region39: #{tpu_custom_call.1} parent=5 // pred_region
        _
      $region40: #{tpu_custom_call.1} parent=5 // pred_fallthru
        _
      %p222 = scmp.le.s32.totalorder 1, %s17
      %p223 = scmp.lt.s32.totalorder %s17, 3
      %p224 = pnand %p222, %p223
      %p225 = pneg %p224
      // Predicated region
      $region41: #{tpu_custom_call.1} parent=5 // pred_check
        _
      $region42: #{tpu_custom_call.1} parent=5 // pred_check_branch
        %227 = sbr.rel (%p224) target = $region44
      $region43: #{tpu_custom_call.1} parent=5 // pred_region
        %s228 = ssub.s32 %s17, 1
        // Predicated region
        $region45: #{tpu_custom_call.1} parent=43 // pred_check
          %p229 = pneg %p38
        $region46: #{tpu_custom_call.1} parent=43 // pred_check_branch
          %231 = sbr.rel (%p229) target = $region48
        $region47: #{tpu_custom_call.1} parent=43 // pred_region
          %232 = dma.done [#allocation4], 16
        $region48: #{tpu_custom_call.1} parent=43 // pred_fallthru
          _
        // Predicated region
        $region49: #{tpu_custom_call.1} parent=43 // pred_check
          %p233 = pneg %p59
        $region50: #{tpu_custom_call.1} parent=43 // pred_check_branch
          %235 = sbr.rel (%p233) target = $region52
        $region51: #{tpu_custom_call.1} parent=43 // pred_region
          %236 = dma.done [#allocation6], 16
        $region52: #{tpu_custom_call.1} parent=43 // pred_fallthru
          _
        %237 = sfence
        %p238 = pneg %p38
        %p239 = pneg %p35
        %p240 = pneg %p59
        %p241 = pneg %p56
        %p242 = pneg %p80
        %p243 = pneg %p77
        %p244 = pneg %p101
        %p245 = pneg %p98
        %p246 = pneg %p122
        %p247 = pneg %p119
        %p248 = pneg %p143
        %p249 = pneg %p140
        %p250 = pneg %p169
        %p251 = pneg %p166
        %s252 = sand.u32 %s156, 1
        %s253 = scalar_lea.sflag [#allocation3], %s252
        %s254 = sand.u32 %s156, 1
        %s255 = smul.addr %s254, 16
        %s256 = scalar_lea.vmem [#allocation7], %s255
        %s257 = smul.u32 4, %s22
        %v258 = vld [vmem:[%s2] ss:$2 sm:$0x3]
        %s259 = scalar_lea.vmem %s2, 1
        %v260 = vld [vmem:[%s259] ss:$2 sm:$0x3]
        %v261 = vld [vmem:[%s3] sm:$0xff]
        %v262 = vld [vmem:[%s3 + $0x8] sm:$0xff]
        %v263 = vld [vmem:[%s3 + $0x10] sm:$0xff]
        %v264 = vld [vmem:[%s3 + $0x18] sm:$0xff]
        %v265 = vld [vmem:[%s3 + $0x20] sm:$0xff]
        %v266 = vld [vmem:[%s3 + $0x28] sm:$0xff]
        %v267 = vld [vmem:[%s3 + $0x30] sm:$0xff]
        %v268 = vld [vmem:[%s3 + $0x38] sm:$0xff]
        %v269 = vld [vmem:[%s3 + $0x40] sm:$0xff]
        %v270 = vld [vmem:[%s3 + $0x48] sm:$0xff]
        %v271 = vld [vmem:[%s3 + $0x50] sm:$0xff]
        %v272 = vld [vmem:[%s3 + $0x58] sm:$0xff]
        %v273 = vld [vmem:[%s3 + $0x60] sm:$0xff]
        %v274 = vld [vmem:[%s3 + $0x68] sm:$0xff]
        %v275 = vld [vmem:[%s3 + $0x70] sm:$0xff]
        %v276 = vld [vmem:[%s3 + $0x78] sm:$0xff]
        %v277 = vld [vmem:[%s3 + $0x80] sm:$0xff]
        %v278 = vld [vmem:[%s3 + $0x88] sm:$0xff]
        %v279 = vld [vmem:[%s3 + $0x90] sm:$0xff]
        %v280 = vld [vmem:[%s3 + $0x98] sm:$0xff]
        %v281 = vld [vmem:[%s3 + $0xa0] sm:$0xff]
        %v282 = vld [vmem:[%s3 + $0xa8] sm:$0xff]
        %v283 = vld [vmem:[%s3 + $0xb0] sm:$0xff]
        %v284 = vld [vmem:[%s3 + $0xb8] sm:$0xff]
        %v285 = vld [vmem:[%s3 + $0xc0] sm:$0xff]
        %v286 = vld [vmem:[%s3 + $0xc8] sm:$0xff]
        %v287 = vld [vmem:[%s3 + $0xd0] sm:$0xff]
        %v288 = vld [vmem:[%s3 + $0xd8] sm:$0xff]
        %v289 = vld [vmem:[%s3 + $0xe0] sm:$0xff]
        %v290 = vld [vmem:[%s3 + $0xe8] sm:$0xff]
        %v291 = vld [vmem:[%s3 + $0xf0] sm:$0xff]
        %v292 = vld [vmem:[%s3 + $0xf8] sm:$0xff]
        loop: start=0, step=1, limit=4
        $region53: #{tpu_custom_call.1} parent=43 // loop_pre_header
          _
        $region54: #{tpu_custom_call.1} parent=43 // loop_header
          %s294 = sphi 0, %s298
          %p295 = scmp.ge.s32.totalorder %s294, 4
        $region55: #{tpu_custom_call.1} parent=43 // loop_header_branch
          %297 = sbr.rel (%p295) target = $region59
        $region56: #{tpu_custom_call.1} parent=43 // loop_body
          %s299 = smul.u32 %s22, 4
          %s300 = sadd.s32 %s299, %s294
          %s301 = smul.u32 %s300, 8
          %s302 = sld [smem:[#allocation2 + %s300]]
          %s303 = sadd.s32 %s301, 1
          %s304 = sld [smem:[#allocation5 + %s303]]
          %s305 = sadd.s32 %s301, 2
          %s306 = sld [smem:[#allocation5 + %s305]]
          %s307 = sadd.s32 %s301, 3
          %s308 = sld [smem:[#allocation5 + %s307]]
          %s309 = sadd.s32 %s301, 4
          %s310 = sld [smem:[#allocation5 + %s309]]
          %s311 = sadd.s32 %s301, 5
          %s312 = sld [smem:[#allocation5 + %s311]]
          %s313 = sadd.s32 %s301, 6
          %s314 = sld [smem:[#allocation5 + %s313]]
          %s315 = smul.f32 %s308, 0.25
          %s316 = smax.f32 %s315, 1.0
          %s317 = smul.f32 %s310, 0.25
          %s318 = smax.f32 %s317, 1.0
          %v319 = vstv %s316
          %v320 = vmul.f32 %v258, %v319
          %v321 = vstv %s318
          %v322 = vmul.f32 %v260, %v321
          %v323 = vstv %s312
          %v324 = vmul.f32 %v320, %v323
          %v325 = vstv %s314
          %v326 = vmul.f32 %v322, %v325
          %v327 = vsub.f32 %v324, %v326
          %s328 = smul.f32 %s304, 0.25
          %v329 = vstv %s328
          %v330 = vadd.f32 %v327, %v329
          %v331 = vmul.f32 %v320, %v325
          %v332 = vmul.f32 %v322, %v323
          %v333 = vadd.f32 %v331, %v332
          %s334 = smul.f32 %s306, 0.25
          %v335 = vstv %s334
          %v336 = vadd.f32 %v333, %v335
          %vm337 = vcmp.ge.f32.partialorder %v336, -1.0
          %vm338 = vcmp.le.f32.partialorder %v336, 16.0
          %vm339 = vmand %vm337, %vm338
          %vm340 = vcmp.ge.f32.partialorder %v330, -1.0
          %vm341 = vmand %vm339, %vm340
          %vm342 = vcmp.le.f32.partialorder %v330, 16.0
          %vm343 = vmand %vm341, %vm342
          %v344 = vsel %vm343, 1, 0
          %v345 = vcvt.s32.f32 %v344
          %v346 = vmax.f32 %v336, 0.0
          %v347 = vmin.f32 %v346, 15.0
          %v348 = vmax.f32 %v330, 0.0
          %v349 = vmin.f32 %v348, 15.0
          %v351 = vlaneseq
          %v352 = vshrl.u32 %v351, 7
          %v353 = vsub.s32 0, %v352
          %v354 = vrot.slane %v347, %v353
          %v355 = vlaneseq
          %v356 = vshrl.u32 %v355, 7
          %v357 = vsub.s32 1, %v356
          %v358 = vrot.slane %v347, %v357
          %362 = vset.pattern.permute.xlu0 0
          %363 = vperm.xlu0 %362, %v261
          %v364 = vpop.permute.xlu0 %363
          %367 = vset.pattern.permute.xlu0 0
          %368 = vperm.xlu0 %367, %v262
          %v369 = vpop.permute.xlu0 %368
          %372 = vset.pattern.permute.xlu0 0
          %373 = vperm.xlu0 %372, %v263
          %v374 = vpop.permute.xlu0 %373
          %377 = vset.pattern.permute.xlu0 0
          %378 = vperm.xlu0 %377, %v264
          %v379 = vpop.permute.xlu0 %378
          %382 = vset.pattern.permute.xlu0 0
          %383 = vperm.xlu0 %382, %v265
          %v384 = vpop.permute.xlu0 %383
          %387 = vset.pattern.permute.xlu0 0
          %388 = vperm.xlu0 %387, %v266
          %v389 = vpop.permute.xlu0 %388
          %392 = vset.pattern.permute.xlu0 0
          %393 = vperm.xlu0 %392, %v267
          %v394 = vpop.permute.xlu0 %393
          %397 = vset.pattern.permute.xlu0 0
          %398 = vperm.xlu0 %397, %v268
          %v399 = vpop.permute.xlu0 %398
          %402 = vset.pattern.permute.xlu0 0
          %403 = vperm.xlu0 %402, %v269
          %v404 = vpop.permute.xlu0 %403
          %407 = vset.pattern.permute.xlu0 0
          %408 = vperm.xlu0 %407, %v270
          %v409 = vpop.permute.xlu0 %408
          %412 = vset.pattern.permute.xlu0 0
          %413 = vperm.xlu0 %412, %v271
          %v414 = vpop.permute.xlu0 %413
          %417 = vset.pattern.permute.xlu0 0
          %418 = vperm.xlu0 %417, %v272
          %v419 = vpop.permute.xlu0 %418
          %422 = vset.pattern.permute.xlu0 0
          %423 = vperm.xlu0 %422, %v273
          %v424 = vpop.permute.xlu0 %423
          %427 = vset.pattern.permute.xlu0 0
          %428 = vperm.xlu0 %427, %v274
          %v429 = vpop.permute.xlu0 %428
          %432 = vset.pattern.permute.xlu0 0
          %433 = vperm.xlu0 %432, %v275
          %v434 = vpop.permute.xlu0 %433
          %437 = vset.pattern.permute.xlu0 0
          %438 = vperm.xlu0 %437, %v276
          %v439 = vpop.permute.xlu0 %438
          %442 = vset.pattern.permute.xlu0 0
          %443 = vperm.xlu0 %442, %v277
          %v444 = vpop.permute.xlu0 %443
          %447 = vset.pattern.permute.xlu0 0
          %448 = vperm.xlu0 %447, %v278
          %v449 = vpop.permute.xlu0 %448
          %452 = vset.pattern.permute.xlu0 0
          %453 = vperm.xlu0 %452, %v279
          %v454 = vpop.permute.xlu0 %453
          %457 = vset.pattern.permute.xlu0 0
          %458 = vperm.xlu0 %457, %v280
          %v459 = vpop.permute.xlu0 %458
          %462 = vset.pattern.permute.xlu0 0
          %463 = vperm.xlu0 %462, %v281
          %v464 = vpop.permute.xlu0 %463
          %467 = vset.pattern.permute.xlu0 0
          %468 = vperm.xlu0 %467, %v282
          %v469 = vpop.permute.xlu0 %468
          %472 = vset.pattern.permute.xlu0 0
          %473 = vperm.xlu0 %472, %v283
          %v474 = vpop.permute.xlu0 %473
          %477 = vset.pattern.permute.xlu0 0
          %478 = vperm.xlu0 %477, %v284
          %v479 = vpop.permute.xlu0 %478
          %482 = vset.pattern.permute.xlu0 0
          %483 = vperm.xlu0 %482, %v285
          %v484 = vpop.permute.xlu0 %483
          %487 = vset.pattern.permute.xlu0 0
          %488 = vperm.xlu0 %487, %v286
          %v489 = vpop.permute.xlu0 %488
          %492 = vset.pattern.permute.xlu0 0
          %493 = vperm.xlu0 %492, %v287
          %v494 = vpop.permute.xlu0 %493
          %497 = vset.pattern.permute.xlu0 0
          %498 = vperm.xlu0 %497, %v288
          %v499 = vpop.permute.xlu0 %498
          %502 = vset.pattern.permute.xlu0 0
          %503 = vperm.xlu0 %502, %v289
          %v504 = vpop.permute.xlu0 %503
          %507 = vset.pattern.permute.xlu0 0
          %508 = vperm.xlu0 %507, %v290
          %v509 = vpop.permute.xlu0 %508
          %512 = vset.pattern.permute.xlu0 0
          %513 = vperm.xlu0 %512, %v291
          %v514 = vpop.permute.xlu0 %513
          %517 = vset.pattern.permute.xlu0 0
          %518 = vperm.xlu0 %517, %v292
          %v519 = vpop.permute.xlu0 %518
          %v521 = vsub.f32 %v354, %v364
          %v522 = vsub.f32 %v358, %v364
          %v523 = vsub.f32 %v354, %v369
          %v524 = vsub.f32 %v358, %v369
          %v525 = vsub.f32 %v354, %v374
          %v526 = vsub.f32 %v358, %v374
          %v527 = vsub.f32 %v354, %v379
          %v528 = vsub.f32 %v358, %v379
          %v529 = vsub.f32 %v354, %v384
          %v530 = vsub.f32 %v358, %v384
          %v531 = vsub.f32 %v354, %v389
          %v532 = vsub.f32 %v358, %v389
          %v533 = vsub.f32 %v354, %v394
          %v534 = vsub.f32 %v358, %v394
          %v535 = vsub.f32 %v354, %v399
          %v536 = vsub.f32 %v358, %v399
          %v537 = vsub.f32 %v354, %v404
          %v538 = vsub.f32 %v358, %v404
          %v539 = vsub.f32 %v354, %v409
          %v540 = vsub.f32 %v358, %v409
          %v541 = vsub.f32 %v354, %v414
          %v542 = vsub.f32 %v358, %v414
          %v543 = vsub.f32 %v354, %v419
          %v544 = vsub.f32 %v358, %v419
          %v545 = vsub.f32 %v354, %v424
          %v546 = vsub.f32 %v358, %v424
          %v547 = vsub.f32 %v354, %v429
          %v548 = vsub.f32 %v358, %v429
          %v549 = vsub.f32 %v354, %v434
          %v550 = vsub.f32 %v358, %v434
          %v551 = vsub.f32 %v354, %v439
          %v552 = vsub.f32 %v358, %v439
          %v553 = vsub.f32 %v354, %v444
          %v554 = vsub.f32 %v358, %v444
          %v555 = vsub.f32 %v354, %v449
          %v556 = vsub.f32 %v358, %v449
          %v557 = vsub.f32 %v354, %v454
          %v558 = vsub.f32 %v358, %v454
          %v559 = vsub.f32 %v354, %v459
          %v560 = vsub.f32 %v358, %v459
          %v561 = vsub.f32 %v354, %v464
          %v562 = vsub.f32 %v358, %v464
          %v563 = vsub.f32 %v354, %v469
          %v564 = vsub.f32 %v358, %v469
          %v565 = vsub.f32 %v354, %v474
          %v566 = vsub.f32 %v358, %v474
          %v567 = vsub.f32 %v354, %v479
          %v568 = vsub.f32 %v358, %v479
          %v569 = vsub.f32 %v354, %v484
          %v570 = vsub.f32 %v358, %v484
          %v571 = vsub.f32 %v354, %v489
          %v572 = vsub.f32 %v358, %v489
          %v573 = vsub.f32 %v354, %v494
          %v574 = vsub.f32 %v358, %v494
          %v575 = vsub.f32 %v354, %v499
          %v576 = vsub.f32 %v358, %v499
          %v577 = vsub.f32 %v354, %v504
          %v578 = vsub.f32 %v358, %v504
          %v579 = vsub.f32 %v354, %v509
          %v580 = vsub.f32 %v358, %v509
          %v581 = vsub.f32 %v354, %v514
          %v582 = vsub.f32 %v358, %v514
          %v583 = vsub.f32 %v354, %v519
          %v584 = vsub.f32 %v358, %v519
          %v585 = vand.u32 2147483647, %v521
          %v586 = vand.u32 2147483647, %v522
          %v587 = vand.u32 2147483647, %v523
          %v588 = vand.u32 2147483647, %v524
          %v589 = vand.u32 2147483647, %v525
          %v590 = vand.u32 2147483647, %v526
          %v591 = vand.u32 2147483647, %v527
          %v592 = vand.u32 2147483647, %v528
          %v593 = vand.u32 2147483647, %v529
          %v594 = vand.u32 2147483647, %v530
          %v595 = vand.u32 2147483647, %v531
          %v596 = vand.u32 2147483647, %v532
          %v597 = vand.u32 2147483647, %v533
          %v598 = vand.u32 2147483647, %v534
          %v599 = vand.u32 2147483647, %v535
          %v600 = vand.u32 2147483647, %v536
          %v601 = vand.u32 2147483647, %v537
          %v602 = vand.u32 2147483647, %v538
          %v603 = vand.u32 2147483647, %v539
          %v604 = vand.u32 2147483647, %v540
          %v605 = vand.u32 2147483647, %v541
          %v606 = vand.u32 2147483647, %v542
          %v607 = vand.u32 2147483647, %v543
          %v608 = vand.u32 2147483647, %v544
          %v609 = vand.u32 2147483647, %v545
          %v610 = vand.u32 2147483647, %v546
          %v611 = vand.u32 2147483647, %v547
          %v612 = vand.u32 2147483647, %v548
          %v613 = vand.u32 2147483647, %v549
          %v614 = vand.u32 2147483647, %v550
          %v615 = vand.u32 2147483647, %v551
          %v616 = vand.u32 2147483647, %v552
          %v617 = vand.u32 2147483647, %v553
          %v618 = vand.u32 2147483647, %v554
          %v619 = vand.u32 2147483647, %v555
          %v620 = vand.u32 2147483647, %v556
          %v621 = vand.u32 2147483647, %v557
          %v622 = vand.u32 2147483647, %v558
          %v623 = vand.u32 2147483647, %v559
          %v624 = vand.u32 2147483647, %v560
          %v625 = vand.u32 2147483647, %v561
          %v626 = vand.u32 2147483647, %v562
          %v627 = vand.u32 2147483647, %v563
          %v628 = vand.u32 2147483647, %v564
          %v629 = vand.u32 2147483647, %v565
          %v630 = vand.u32 2147483647, %v566
          %v631 = vand.u32 2147483647, %v567
          %v632 = vand.u32 2147483647, %v568
          %v633 = vand.u32 2147483647, %v569
          %v634 = vand.u32 2147483647, %v570
          %v635 = vand.u32 2147483647, %v571
          %v636 = vand.u32 2147483647, %v572
          %v637 = vand.u32 2147483647, %v573
          %v638 = vand.u32 2147483647, %v574
          %v639 = vand.u32 2147483647, %v575
          %v640 = vand.u32 2147483647, %v576
          %v641 = vand.u32 2147483647, %v577
          %v642 = vand.u32 2147483647, %v578
          %v643 = vand.u32 2147483647, %v579
          %v644 = vand.u32 2147483647, %v580
          %v645 = vand.u32 2147483647, %v581
          %v646 = vand.u32 2147483647, %v582
          %v647 = vand.u32 2147483647, %v583
          %v648 = vand.u32 2147483647, %v584
          %v649 = vsub.f32 1.0, %v585
          %v650 = vsub.f32 1.0, %v586
          %v651 = vsub.f32 1.0, %v587
          %v652 = vsub.f32 1.0, %v588
          %v653 = vsub.f32 1.0, %v589
          %v654 = vsub.f32 1.0, %v590
          %v655 = vsub.f32 1.0, %v591
          %v656 = vsub.f32 1.0, %v592
          %v657 = vsub.f32 1.0, %v593
          %v658 = vsub.f32 1.0, %v594
          %v659 = vsub.f32 1.0, %v595
          %v660 = vsub.f32 1.0, %v596
          %v661 = vsub.f32 1.0, %v597
          %v662 = vsub.f32 1.0, %v598
          %v663 = vsub.f32 1.0, %v599
          %v664 = vsub.f32 1.0, %v600
          %v665 = vsub.f32 1.0, %v601
          %v666 = vsub.f32 1.0, %v602
          %v667 = vsub.f32 1.0, %v603
          %v668 = vsub.f32 1.0, %v604
          %v669 = vsub.f32 1.0, %v605
          %v670 = vsub.f32 1.0, %v606
          %v671 = vsub.f32 1.0, %v607
          %v672 = vsub.f32 1.0, %v608
          %v673 = vsub.f32 1.0, %v609
          %v674 = vsub.f32 1.0, %v610
          %v675 = vsub.f32 1.0, %v611
          %v676 = vsub.f32 1.0, %v612
          %v677 = vsub.f32 1.0, %v613
          %v678 = vsub.f32 1.0, %v614
          %v679 = vsub.f32 1.0, %v615
          %v680 = vsub.f32 1.0, %v616
          %v681 = vsub.f32 1.0, %v617
          %v682 = vsub.f32 1.0, %v618
          %v683 = vsub.f32 1.0, %v619
          %v684 = vsub.f32 1.0, %v620
          %v685 = vsub.f32 1.0, %v621
          %v686 = vsub.f32 1.0, %v622
          %v687 = vsub.f32 1.0, %v623
          %v688 = vsub.f32 1.0, %v624
          %v689 = vsub.f32 1.0, %v625
          %v690 = vsub.f32 1.0, %v626
          %v691 = vsub.f32 1.0, %v627
          %v692 = vsub.f32 1.0, %v628
          %v693 = vsub.f32 1.0, %v629
          %v694 = vsub.f32 1.0, %v630
          %v695 = vsub.f32 1.0, %v631
          %v696 = vsub.f32 1.0, %v632
          %v697 = vsub.f32 1.0, %v633
          %v698 = vsub.f32 1.0, %v634
          %v699 = vsub.f32 1.0, %v635
          %v700 = vsub.f32 1.0, %v636
          %v701 = vsub.f32 1.0, %v637
          %v702 = vsub.f32 1.0, %v638
          %v703 = vsub.f32 1.0, %v639
          %v704 = vsub.f32 1.0, %v640
          %v705 = vsub.f32 1.0, %v641
          %v706 = vsub.f32 1.0, %v642
          %v707 = vsub.f32 1.0, %v643
          %v708 = vsub.f32 1.0, %v644
          %v709 = vsub.f32 1.0, %v645
          %v710 = vsub.f32 1.0, %v646
          %v711 = vsub.f32 1.0, %v647
          %v712 = vsub.f32 1.0, %v648
          %v713 = vmax.f32 %v649, 0.0
          %v714 = vmax.f32 %v650, 0.0
          %v715 = vmax.f32 %v651, 0.0
          %v716 = vmax.f32 %v652, 0.0
          %v717 = vmax.f32 %v653, 0.0
          %v718 = vmax.f32 %v654, 0.0
          %v719 = vmax.f32 %v655, 0.0
          %v720 = vmax.f32 %v656, 0.0
          %v721 = vmax.f32 %v657, 0.0
          %v722 = vmax.f32 %v658, 0.0
          %v723 = vmax.f32 %v659, 0.0
          %v724 = vmax.f32 %v660, 0.0
          %v725 = vmax.f32 %v661, 0.0
          %v726 = vmax.f32 %v662, 0.0
          %v727 = vmax.f32 %v663, 0.0
          %v728 = vmax.f32 %v664, 0.0
          %v729 = vmax.f32 %v665, 0.0
          %v730 = vmax.f32 %v666, 0.0
          %v731 = vmax.f32 %v667, 0.0
          %v732 = vmax.f32 %v668, 0.0
          %v733 = vmax.f32 %v669, 0.0
          %v734 = vmax.f32 %v670, 0.0
          %v735 = vmax.f32 %v671, 0.0
          %v736 = vmax.f32 %v672, 0.0
          %v737 = vmax.f32 %v673, 0.0
          %v738 = vmax.f32 %v674, 0.0
          %v739 = vmax.f32 %v675, 0.0
          %v740 = vmax.f32 %v676, 0.0
          %v741 = vmax.f32 %v677, 0.0
          %v742 = vmax.f32 %v678, 0.0
          %v743 = vmax.f32 %v679, 0.0
          %v744 = vmax.f32 %v680, 0.0
          %v745 = vmax.f32 %v681, 0.0
          %v746 = vmax.f32 %v682, 0.0
          %v747 = vmax.f32 %v683, 0.0
          %v748 = vmax.f32 %v684, 0.0
          %v749 = vmax.f32 %v685, 0.0
          %v750 = vmax.f32 %v686, 0.0
          %v751 = vmax.f32 %v687, 0.0
          %v752 = vmax.f32 %v688, 0.0
          %v753 = vmax.f32 %v689, 0.0
          %v754 = vmax.f32 %v690, 0.0
          %v755 = vmax.f32 %v691, 0.0
          %v756 = vmax.f32 %v692, 0.0
          %v757 = vmax.f32 %v693, 0.0
          %v758 = vmax.f32 %v694, 0.0
          %v759 = vmax.f32 %v695, 0.0
          %v760 = vmax.f32 %v696, 0.0
          %v761 = vmax.f32 %v697, 0.0
          %v762 = vmax.f32 %v698, 0.0
          %v763 = vmax.f32 %v699, 0.0
          %v764 = vmax.f32 %v700, 0.0
          %v765 = vmax.f32 %v701, 0.0
          %v766 = vmax.f32 %v702, 0.0
          %v767 = vmax.f32 %v703, 0.0
          %v768 = vmax.f32 %v704, 0.0
          %v769 = vmax.f32 %v705, 0.0
          %v770 = vmax.f32 %v706, 0.0
          %v771 = vmax.f32 %v707, 0.0
          %v772 = vmax.f32 %v708, 0.0
          %v773 = vmax.f32 %v709, 0.0
          %v774 = vmax.f32 %v710, 0.0
          %v775 = vmax.f32 %v711, 0.0
          %v776 = vmax.f32 %v712, 0.0
          %v778 = vlaneseq
          %v779 = vshrl.u32 %v778, 7
          %v780 = vsub.s32 0, %v779
          %v781 = vrot.slane %v349, %v780
          %v782 = vlaneseq
          %v783 = vshrl.u32 %v782, 7
          %v784 = vsub.s32 1, %v783
          %v785 = vrot.slane %v349, %v784
          %788 = vset.pattern.permute.xlu0 1
          %789 = vperm.xlu0 %788, %v261
          %v790 = vpop.permute.xlu0 %789
          %792 = vset.pattern.permute.xlu0 1
          %793 = vperm.xlu0 %792, %v262
          %v794 = vpop.permute.xlu0 %793
          %796 = vset.pattern.permute.xlu0 1
          %797 = vperm.xlu0 %796, %v263
          %v798 = vpop.permute.xlu0 %797
          %800 = vset.pattern.permute.xlu0 1
          %801 = vperm.xlu0 %800, %v264
          %v802 = vpop.permute.xlu0 %801
          %804 = vset.pattern.permute.xlu0 1
          %805 = vperm.xlu0 %804, %v265
          %v806 = vpop.permute.xlu0 %805
          %808 = vset.pattern.permute.xlu0 1
          %809 = vperm.xlu0 %808, %v266
          %v810 = vpop.permute.xlu0 %809
          %812 = vset.pattern.permute.xlu0 1
          %813 = vperm.xlu0 %812, %v267
          %v814 = vpop.permute.xlu0 %813
          %816 = vset.pattern.permute.xlu0 1
          %817 = vperm.xlu0 %816, %v268
          %v818 = vpop.permute.xlu0 %817
          %820 = vset.pattern.permute.xlu0 1
          %821 = vperm.xlu0 %820, %v269
          %v822 = vpop.permute.xlu0 %821
          %824 = vset.pattern.permute.xlu0 1
          %825 = vperm.xlu0 %824, %v270
          %v826 = vpop.permute.xlu0 %825
          %828 = vset.pattern.permute.xlu0 1
          %829 = vperm.xlu0 %828, %v271
          %v830 = vpop.permute.xlu0 %829
          %832 = vset.pattern.permute.xlu0 1
          %833 = vperm.xlu0 %832, %v272
          %v834 = vpop.permute.xlu0 %833
          %836 = vset.pattern.permute.xlu0 1
          %837 = vperm.xlu0 %836, %v273
          %v838 = vpop.permute.xlu0 %837
          %840 = vset.pattern.permute.xlu0 1
          %841 = vperm.xlu0 %840, %v274
          %v842 = vpop.permute.xlu0 %841
          %844 = vset.pattern.permute.xlu0 1
          %845 = vperm.xlu0 %844, %v275
          %v846 = vpop.permute.xlu0 %845
          %848 = vset.pattern.permute.xlu0 1
          %849 = vperm.xlu0 %848, %v276
          %v850 = vpop.permute.xlu0 %849
          %852 = vset.pattern.permute.xlu0 1
          %853 = vperm.xlu0 %852, %v277
          %v854 = vpop.permute.xlu0 %853
          %856 = vset.pattern.permute.xlu0 1
          %857 = vperm.xlu0 %856, %v278
          %v858 = vpop.permute.xlu0 %857
          %860 = vset.pattern.permute.xlu0 1
          %861 = vperm.xlu0 %860, %v279
          %v862 = vpop.permute.xlu0 %861
          %864 = vset.pattern.permute.xlu0 1
          %865 = vperm.xlu0 %864, %v280
          %v866 = vpop.permute.xlu0 %865
          %868 = vset.pattern.permute.xlu0 1
          %869 = vperm.xlu0 %868, %v281
          %v870 = vpop.permute.xlu0 %869
          %872 = vset.pattern.permute.xlu0 1
          %873 = vperm.xlu0 %872, %v282
          %v874 = vpop.permute.xlu0 %873
          %876 = vset.pattern.permute.xlu0 1
          %877 = vperm.xlu0 %876, %v283
          %v878 = vpop.permute.xlu0 %877
          %880 = vset.pattern.permute.xlu0 1
          %881 = vperm.xlu0 %880, %v284
          %v882 = vpop.permute.xlu0 %881
          %884 = vset.pattern.permute.xlu0 1
          %885 = vperm.xlu0 %884, %v285
          %v886 = vpop.permute.xlu0 %885
          %888 = vset.pattern.permute.xlu0 1
          %889 = vperm.xlu0 %888, %v286
          %v890 = vpop.permute.xlu0 %889
          %892 = vset.pattern.permute.xlu0 1
          %893 = vperm.xlu0 %892, %v287
          %v894 = vpop.permute.xlu0 %893
          %896 = vset.pattern.permute.xlu0 1
          %897 = vperm.xlu0 %896, %v288
          %v898 = vpop.permute.xlu0 %897
          %900 = vset.pattern.permute.xlu0 1
          %901 = vperm.xlu0 %900, %v289
          %v902 = vpop.permute.xlu0 %901
          %904 = vset.pattern.permute.xlu0 1
          %905 = vperm.xlu0 %904, %v290
          %v906 = vpop.permute.xlu0 %905
          %908 = vset.pattern.permute.xlu0 1
          %909 = vperm.xlu0 %908, %v291
          %v910 = vpop.permute.xlu0 %909
          %912 = vset.pattern.permute.xlu0 1
          %913 = vperm.xlu0 %912, %v292
          %v914 = vpop.permute.xlu0 %913
          %v916 = vsub.f32 %v781, %v790
          %v917 = vsub.f32 %v785, %v790
          %v918 = vsub.f32 %v781, %v794
          %v919 = vsub.f32 %v785, %v794
          %v920 = vsub.f32 %v781, %v798
          %v921 = vsub.f32 %v785, %v798
          %v922 = vsub.f32 %v781, %v802
          %v923 = vsub.f32 %v785, %v802
          %v924 = vsub.f32 %v781, %v806
          %v925 = vsub.f32 %v785, %v806
          %v926 = vsub.f32 %v781, %v810
          %v927 = vsub.f32 %v785, %v810
          %v928 = vsub.f32 %v781, %v814
          %v929 = vsub.f32 %v785, %v814
          %v930 = vsub.f32 %v781, %v818
          %v931 = vsub.f32 %v785, %v818
          %v932 = vsub.f32 %v781, %v822
          %v933 = vsub.f32 %v785, %v822
          %v934 = vsub.f32 %v781, %v826
          %v935 = vsub.f32 %v785, %v826
          %v936 = vsub.f32 %v781, %v830
          %v937 = vsub.f32 %v785, %v830
          %v938 = vsub.f32 %v781, %v834
          %v939 = vsub.f32 %v785, %v834
          %v940 = vsub.f32 %v781, %v838
          %v941 = vsub.f32 %v785, %v838
          %v942 = vsub.f32 %v781, %v842
          %v943 = vsub.f32 %v785, %v842
          %v944 = vsub.f32 %v781, %v846
          %v945 = vsub.f32 %v785, %v846
          %v946 = vsub.f32 %v781, %v850
          %v947 = vsub.f32 %v785, %v850
          %v948 = vsub.f32 %v781, %v854
          %v949 = vsub.f32 %v785, %v854
          %v950 = vsub.f32 %v781, %v858
          %v951 = vsub.f32 %v785, %v858
          %v952 = vsub.f32 %v781, %v862
          %v953 = vsub.f32 %v785, %v862
          %v954 = vsub.f32 %v781, %v866
          %v955 = vsub.f32 %v785, %v866
          %v956 = vsub.f32 %v781, %v870
          %v957 = vsub.f32 %v785, %v870
          %v958 = vsub.f32 %v781, %v874
          %v959 = vsub.f32 %v785, %v874
          %v960 = vsub.f32 %v781, %v878
          %v961 = vsub.f32 %v785, %v878
          %v962 = vsub.f32 %v781, %v882
          %v963 = vsub.f32 %v785, %v882
          %v964 = vsub.f32 %v781, %v886
          %v965 = vsub.f32 %v785, %v886
          %v966 = vsub.f32 %v781, %v890
          %v967 = vsub.f32 %v785, %v890
          %v968 = vsub.f32 %v781, %v894
          %v969 = vsub.f32 %v785, %v894
          %v970 = vsub.f32 %v781, %v898
          %v971 = vsub.f32 %v785, %v898
          %v972 = vsub.f32 %v781, %v902
          %v973 = vsub.f32 %v785, %v902
          %v974 = vsub.f32 %v781, %v906
          %v975 = vsub.f32 %v785, %v906
          %v976 = vsub.f32 %v781, %v910
          %v977 = vsub.f32 %v785, %v910
          %v978 = vsub.f32 %v781, %v914
          %v979 = vsub.f32 %v785, %v914
          %v980 = vand.u32 2147483647, %v916
          %v981 = vand.u32 2147483647, %v917
          %v982 = vand.u32 2147483647, %v918
          %v983 = vand.u32 2147483647, %v919
          %v984 = vand.u32 2147483647, %v920
          %v985 = vand.u32 2147483647, %v921
          %v986 = vand.u32 2147483647, %v922
          %v987 = vand.u32 2147483647, %v923
          %v988 = vand.u32 2147483647, %v924
          %v989 = vand.u32 2147483647, %v925
          %v990 = vand.u32 2147483647, %v926
          %v991 = vand.u32 2147483647, %v927
          %v992 = vand.u32 2147483647, %v928
          %v993 = vand.u32 2147483647, %v929
          %v994 = vand.u32 2147483647, %v930
          %v995 = vand.u32 2147483647, %v931
          %v996 = vand.u32 2147483647, %v932
          %v997 = vand.u32 2147483647, %v933
          %v998 = vand.u32 2147483647, %v934
          %v999 = vand.u32 2147483647, %v935
          %v1000 = vand.u32 2147483647, %v936
          %v1001 = vand.u32 2147483647, %v937
          %v1002 = vand.u32 2147483647, %v938
          %v1003 = vand.u32 2147483647, %v939
          %v1004 = vand.u32 2147483647, %v940
          %v1005 = vand.u32 2147483647, %v941
          %v1006 = vand.u32 2147483647, %v942
          %v1007 = vand.u32 2147483647, %v943
          %v1008 = vand.u32 2147483647, %v944
          %v1009 = vand.u32 2147483647, %v945
          %v1010 = vand.u32 2147483647, %v946
          %v1011 = vand.u32 2147483647, %v947
          %v1012 = vand.u32 2147483647, %v948
          %v1013 = vand.u32 2147483647, %v949
          %v1014 = vand.u32 2147483647, %v950
          %v1015 = vand.u32 2147483647, %v951
          %v1016 = vand.u32 2147483647, %v952
          %v1017 = vand.u32 2147483647, %v953
          %v1018 = vand.u32 2147483647, %v954
          %v1019 = vand.u32 2147483647, %v955
          %v1020 = vand.u32 2147483647, %v956
          %v1021 = vand.u32 2147483647, %v957
          %v1022 = vand.u32 2147483647, %v958
          %v1023 = vand.u32 2147483647, %v959
          %v1024 = vand.u32 2147483647, %v960
          %v1025 = vand.u32 2147483647, %v961
          %v1026 = vand.u32 2147483647, %v962
          %v1027 = vand.u32 2147483647, %v963
          %v1028 = vand.u32 2147483647, %v964
          %v1029 = vand.u32 2147483647, %v965
          %v1030 = vand.u32 2147483647, %v966
          %v1031 = vand.u32 2147483647, %v967
          %v1032 = vand.u32 2147483647, %v968
          %v1033 = vand.u32 2147483647, %v969
          %v1034 = vand.u32 2147483647, %v970
          %v1035 = vand.u32 2147483647, %v971
          %v1036 = vand.u32 2147483647, %v972
          %v1037 = vand.u32 2147483647, %v973
          %v1038 = vand.u32 2147483647, %v974
          %v1039 = vand.u32 2147483647, %v975
          %v1040 = vand.u32 2147483647, %v976
          %v1041 = vand.u32 2147483647, %v977
          %v1042 = vand.u32 2147483647, %v978
          %v1043 = vand.u32 2147483647, %v979
          %v1044 = vsub.f32 1.0, %v980
          %v1045 = vsub.f32 1.0, %v981
          %v1046 = vsub.f32 1.0, %v982
          %v1047 = vsub.f32 1.0, %v983
          %v1048 = vsub.f32 1.0, %v984
          %v1049 = vsub.f32 1.0, %v985
          %v1050 = vsub.f32 1.0, %v986
          %v1051 = vsub.f32 1.0, %v987
          %v1052 = vsub.f32 1.0, %v988
          %v1053 = vsub.f32 1.0, %v989
          %v1054 = vsub.f32 1.0, %v990
          %v1055 = vsub.f32 1.0, %v991
          %v1056 = vsub.f32 1.0, %v992
          %v1057 = vsub.f32 1.0, %v993
          %v1058 = vsub.f32 1.0, %v994
          %v1059 = vsub.f32 1.0, %v995
          %v1060 = vsub.f32 1.0, %v996
          %v1061 = vsub.f32 1.0, %v997
          %v1062 = vsub.f32 1.0, %v998
          %v1063 = vsub.f32 1.0, %v999
          %v1064 = vsub.f32 1.0, %v1000
          %v1065 = vsub.f32 1.0, %v1001
          %v1066 = vsub.f32 1.0, %v1002
          %v1067 = vsub.f32 1.0, %v1003
          %v1068 = vsub.f32 1.0, %v1004
          %v1069 = vsub.f32 1.0, %v1005
          %v1070 = vsub.f32 1.0, %v1006
          %v1071 = vsub.f32 1.0, %v1007
          %v1072 = vsub.f32 1.0, %v1008
          %v1073 = vsub.f32 1.0, %v1009
          %v1074 = vsub.f32 1.0, %v1010
          %v1075 = vsub.f32 1.0, %v1011
          %v1076 = vsub.f32 1.0, %v1012
          %v1077 = vsub.f32 1.0, %v1013
          %v1078 = vsub.f32 1.0, %v1014
          %v1079 = vsub.f32 1.0, %v1015
          %v1080 = vsub.f32 1.0, %v1016
          %v1081 = vsub.f32 1.0, %v1017
          %v1082 = vsub.f32 1.0, %v1018
          %v1083 = vsub.f32 1.0, %v1019
          %v1084 = vsub.f32 1.0, %v1020
          %v1085 = vsub.f32 1.0, %v1021
          %v1086 = vsub.f32 1.0, %v1022
          %v1087 = vsub.f32 1.0, %v1023
          %v1088 = vsub.f32 1.0, %v1024
          %v1089 = vsub.f32 1.0, %v1025
          %v1090 = vsub.f32 1.0, %v1026
          %v1091 = vsub.f32 1.0, %v1027
          %v1092 = vsub.f32 1.0, %v1028
          %v1093 = vsub.f32 1.0, %v1029
          %v1094 = vsub.f32 1.0, %v1030
          %v1095 = vsub.f32 1.0, %v1031
          %v1096 = vsub.f32 1.0, %v1032
          %v1097 = vsub.f32 1.0, %v1033
          %v1098 = vsub.f32 1.0, %v1034
          %v1099 = vsub.f32 1.0, %v1035
          %v1100 = vsub.f32 1.0, %v1036
          %v1101 = vsub.f32 1.0, %v1037
          %v1102 = vsub.f32 1.0, %v1038
          %v1103 = vsub.f32 1.0, %v1039
          %v1104 = vsub.f32 1.0, %v1040
          %v1105 = vsub.f32 1.0, %v1041
          %v1106 = vsub.f32 1.0, %v1042
          %v1107 = vsub.f32 1.0, %v1043
          %v1108 = vmax.f32 %v1044, 0.0
          %v1109 = vmax.f32 %v1045, 0.0
          %v1110 = vmax.f32 %v1046, 0.0
          %v1111 = vmax.f32 %v1047, 0.0
          %v1112 = vmax.f32 %v1048, 0.0
          %v1113 = vmax.f32 %v1049, 0.0
          %v1114 = vmax.f32 %v1050, 0.0
          %v1115 = vmax.f32 %v1051, 0.0
          %v1116 = vmax.f32 %v1052, 0.0
          %v1117 = vmax.f32 %v1053, 0.0
          %v1118 = vmax.f32 %v1054, 0.0
          %v1119 = vmax.f32 %v1055, 0.0
          %v1120 = vmax.f32 %v1056, 0.0
          %v1121 = vmax.f32 %v1057, 0.0
          %v1122 = vmax.f32 %v1058, 0.0
          %v1123 = vmax.f32 %v1059, 0.0
          %v1124 = vmax.f32 %v1060, 0.0
          %v1125 = vmax.f32 %v1061, 0.0
          %v1126 = vmax.f32 %v1062, 0.0
          %v1127 = vmax.f32 %v1063, 0.0
          %v1128 = vmax.f32 %v1064, 0.0
          %v1129 = vmax.f32 %v1065, 0.0
          %v1130 = vmax.f32 %v1066, 0.0
          %v1131 = vmax.f32 %v1067, 0.0
          %v1132 = vmax.f32 %v1068, 0.0
          %v1133 = vmax.f32 %v1069, 0.0
          %v1134 = vmax.f32 %v1070, 0.0
          %v1135 = vmax.f32 %v1071, 0.0
          %v1136 = vmax.f32 %v1072, 0.0
          %v1137 = vmax.f32 %v1073, 0.0
          %v1138 = vmax.f32 %v1074, 0.0
          %v1139 = vmax.f32 %v1075, 0.0
          %v1140 = vmax.f32 %v1076, 0.0
          %v1141 = vmax.f32 %v1077, 0.0
          %v1142 = vmax.f32 %v1078, 0.0
          %v1143 = vmax.f32 %v1079, 0.0
          %v1144 = vmax.f32 %v1080, 0.0
          %v1145 = vmax.f32 %v1081, 0.0
          %v1146 = vmax.f32 %v1082, 0.0
          %v1147 = vmax.f32 %v1083, 0.0
          %v1148 = vmax.f32 %v1084, 0.0
          %v1149 = vmax.f32 %v1085, 0.0
          %v1150 = vmax.f32 %v1086, 0.0
          %v1151 = vmax.f32 %v1087, 0.0
          %v1152 = vmax.f32 %v1088, 0.0
          %v1153 = vmax.f32 %v1089, 0.0
          %v1154 = vmax.f32 %v1090, 0.0
          %v1155 = vmax.f32 %v1091, 0.0
          %v1156 = vmax.f32 %v1092, 0.0
          %v1157 = vmax.f32 %v1093, 0.0
          %v1158 = vmax.f32 %v1094, 0.0
          %v1159 = vmax.f32 %v1095, 0.0
          %v1160 = vmax.f32 %v1096, 0.0
          %v1161 = vmax.f32 %v1097, 0.0
          %v1162 = vmax.f32 %v1098, 0.0
          %v1163 = vmax.f32 %v1099, 0.0
          %v1164 = vmax.f32 %v1100, 0.0
          %v1165 = vmax.f32 %v1101, 0.0
          %v1166 = vmax.f32 %v1102, 0.0
          %v1167 = vmax.f32 %v1103, 0.0
          %v1168 = vmax.f32 %v1104, 0.0
          %v1169 = vmax.f32 %v1105, 0.0
          %v1170 = vmax.f32 %v1106, 0.0
          %v1171 = vmax.f32 %v1107, 0.0
          %v1172 = vmul.f32 %v713, %v1108
          %v1173 = vmul.f32 %v714, %v1109
          %v1174 = vmul.f32 %v715, %v1110
          %v1175 = vmul.f32 %v716, %v1111
          %v1176 = vmul.f32 %v717, %v1112
          %v1177 = vmul.f32 %v718, %v1113
          %v1178 = vmul.f32 %v719, %v1114
          %v1179 = vmul.f32 %v720, %v1115
          %v1180 = vmul.f32 %v721, %v1116
          %v1181 = vmul.f32 %v722, %v1117
          %v1182 = vmul.f32 %v723, %v1118
          %v1183 = vmul.f32 %v724, %v1119
          %v1184 = vmul.f32 %v725, %v1120
          %v1185 = vmul.f32 %v726, %v1121
          %v1186 = vmul.f32 %v727, %v1122
          %v1187 = vmul.f32 %v728, %v1123
          %v1188 = vmul.f32 %v729, %v1124
          %v1189 = vmul.f32 %v730, %v1125
          %v1190 = vmul.f32 %v731, %v1126
          %v1191 = vmul.f32 %v732, %v1127
          %v1192 = vmul.f32 %v733, %v1128
          %v1193 = vmul.f32 %v734, %v1129
          %v1194 = vmul.f32 %v735, %v1130
          %v1195 = vmul.f32 %v736, %v1131
          %v1196 = vmul.f32 %v737, %v1132
          %v1197 = vmul.f32 %v738, %v1133
          %v1198 = vmul.f32 %v739, %v1134
          %v1199 = vmul.f32 %v740, %v1135
          %v1200 = vmul.f32 %v741, %v1136
          %v1201 = vmul.f32 %v742, %v1137
          %v1202 = vmul.f32 %v743, %v1138
          %v1203 = vmul.f32 %v744, %v1139
          %v1204 = vmul.f32 %v745, %v1140
          %v1205 = vmul.f32 %v746, %v1141
          %v1206 = vmul.f32 %v747, %v1142
          %v1207 = vmul.f32 %v748, %v1143
          %v1208 = vmul.f32 %v749, %v1144
          %v1209 = vmul.f32 %v750, %v1145
          %v1210 = vmul.f32 %v751, %v1146
          %v1211 = vmul.f32 %v752, %v1147
          %v1212 = vmul.f32 %v753, %v1148
          %v1213 = vmul.f32 %v754, %v1149
          %v1214 = vmul.f32 %v755, %v1150
          %v1215 = vmul.f32 %v756, %v1151
          %v1216 = vmul.f32 %v757, %v1152
          %v1217 = vmul.f32 %v758, %v1153
          %v1218 = vmul.f32 %v759, %v1154
          %v1219 = vmul.f32 %v760, %v1155
          %v1220 = vmul.f32 %v761, %v1156
          %v1221 = vmul.f32 %v762, %v1157
          %v1222 = vmul.f32 %v763, %v1158
          %v1223 = vmul.f32 %v764, %v1159
          %v1224 = vmul.f32 %v765, %v1160
          %v1225 = vmul.f32 %v766, %v1161
          %v1226 = vmul.f32 %v767, %v1162
          %v1227 = vmul.f32 %v768, %v1163
          %v1228 = vmul.f32 %v769, %v1164
          %v1229 = vmul.f32 %v770, %v1165
          %v1230 = vmul.f32 %v771, %v1166
          %v1231 = vmul.f32 %v772, %v1167
          %v1232 = vmul.f32 %v773, %v1168
          %v1233 = vmul.f32 %v774, %v1169
          %v1234 = vmul.f32 %v775, %v1170
          %v1235 = vmul.f32 %v776, %v1171
          %v1237 = vlaneseq
          %v1238 = vshrl.u32 %v1237, 7
          %v1239 = vsub.s32 0, %v1238
          %v1240 = vrot.slane %v345, %v1239
          %v1241 = vlaneseq
          %v1242 = vshrl.u32 %v1241, 7
          %v1243 = vsub.s32 1, %v1242
          %v1244 = vrot.slane %v345, %v1243
          %v1247 = vmul.f32 %v1172, %v1240
          %v1248 = vmul.f32 %v1173, %v1244
          %v1249 = vmul.f32 %v1174, %v1240
          %v1250 = vmul.f32 %v1175, %v1244
          %v1251 = vmul.f32 %v1176, %v1240
          %v1252 = vmul.f32 %v1177, %v1244
          %v1253 = vmul.f32 %v1178, %v1240
          %v1254 = vmul.f32 %v1179, %v1244
          %v1255 = vmul.f32 %v1180, %v1240
          %v1256 = vmul.f32 %v1181, %v1244
          %v1257 = vmul.f32 %v1182, %v1240
          %v1258 = vmul.f32 %v1183, %v1244
          %v1259 = vmul.f32 %v1184, %v1240
          %v1260 = vmul.f32 %v1185, %v1244
          %v1261 = vmul.f32 %v1186, %v1240
          %v1262 = vmul.f32 %v1187, %v1244
          %v1263 = vmul.f32 %v1188, %v1240
          %v1264 = vmul.f32 %v1189, %v1244
          %v1265 = vmul.f32 %v1190, %v1240
          %v1266 = vmul.f32 %v1191, %v1244
          %v1267 = vmul.f32 %v1192, %v1240
          %v1268 = vmul.f32 %v1193, %v1244
          %v1269 = vmul.f32 %v1194, %v1240
          %v1270 = vmul.f32 %v1195, %v1244
          %v1271 = vmul.f32 %v1196, %v1240
          %v1272 = vmul.f32 %v1197, %v1244
          %v1273 = vmul.f32 %v1198, %v1240
          %v1274 = vmul.f32 %v1199, %v1244
          %v1275 = vmul.f32 %v1200, %v1240
          %v1276 = vmul.f32 %v1201, %v1244
          %v1277 = vmul.f32 %v1202, %v1240
          %v1278 = vmul.f32 %v1203, %v1244
          %v1279 = vmul.f32 %v1204, %v1240
          %v1280 = vmul.f32 %v1205, %v1244
          %v1281 = vmul.f32 %v1206, %v1240
          %v1282 = vmul.f32 %v1207, %v1244
          %v1283 = vmul.f32 %v1208, %v1240
          %v1284 = vmul.f32 %v1209, %v1244
          %v1285 = vmul.f32 %v1210, %v1240
          %v1286 = vmul.f32 %v1211, %v1244
          %v1287 = vmul.f32 %v1212, %v1240
          %v1288 = vmul.f32 %v1213, %v1244
          %v1289 = vmul.f32 %v1214, %v1240
          %v1290 = vmul.f32 %v1215, %v1244
          %v1291 = vmul.f32 %v1216, %v1240
          %v1292 = vmul.f32 %v1217, %v1244
          %v1293 = vmul.f32 %v1218, %v1240
          %v1294 = vmul.f32 %v1219, %v1244
          %v1295 = vmul.f32 %v1220, %v1240
          %v1296 = vmul.f32 %v1221, %v1244
          %v1297 = vmul.f32 %v1222, %v1240
          %v1298 = vmul.f32 %v1223, %v1244
          %v1299 = vmul.f32 %v1224, %v1240
          %v1300 = vmul.f32 %v1225, %v1244
          %v1301 = vmul.f32 %v1226, %v1240
          %v1302 = vmul.f32 %v1227, %v1244
          %v1303 = vmul.f32 %v1228, %v1240
          %v1304 = vmul.f32 %v1229, %v1244
          %v1305 = vmul.f32 %v1230, %v1240
          %v1306 = vmul.f32 %v1231, %v1244
          %v1307 = vmul.f32 %v1232, %v1240
          %v1308 = vmul.f32 %v1233, %v1244
          %v1309 = vmul.f32 %v1234, %v1240
          %v1310 = vmul.f32 %v1235, %v1244
          %s1311 = smul.u32 %s302, 2
          %s1312 = smul.addr %s1311, 4
          %s1313 = scalar_lea.vmem %s5, %s1312
          %v1314 = vld [vmem:[%s1313] sm:$0xff]
          %v1316 = vcombine.high %v1314, %v1314
          %1318 = vmatprep.subr.mxu0 %v1278
          %1319 = vmatpush1.msra.mxu0 %v1277
          %1320 = vmatprep.subr.mxu0 %v1276
          %1321 = vmatpush1.msra.mxu0 %v1275
          %1322 = vmatprep.subr.mxu0 %v1274
          %1323 = vmatpush1.msra.mxu0 %v1273
          %1324 = vmatprep.subr.mxu0 %v1272
          %1325 = vmatpush1.msra.mxu0 %v1271
          %1326 = vmatprep.subr.mxu0 %v1270
          %1327 = vmatpush1.msra.mxu0 %v1269
          %1328 = vmatprep.subr.mxu0 %v1268
          %1329 = vmatpush1.msra.mxu0 %v1267
          %1330 = vmatprep.subr.mxu0 %v1266
          %1331 = vmatpush1.msra.mxu0 %v1265
          %1332 = vmatprep.subr.mxu0 %v1264
          %1333 = vmatpush1.msra.mxu0 %v1263
          %1334 = vmatprep.subr.mxu0 %v1262
          %1335 = vmatpush1.msra.mxu0 %v1261
          %1336 = vmatprep.subr.mxu0 %v1260
          %1337 = vmatpush1.msra.mxu0 %v1259
          %1338 = vmatprep.subr.mxu0 %v1258
          %1339 = vmatpush1.msra.mxu0 %v1257
          %1340 = vmatprep.subr.mxu0 %v1256
          %1341 = vmatpush1.msra.mxu0 %v1255
          %1342 = vmatprep.subr.mxu0 %v1254
          %1343 = vmatpush1.msra.mxu0 %v1253
          %1344 = vmatprep.subr.mxu0 %v1252
          %1345 = vmatpush1.msra.mxu0 %v1251
          %1346 = vmatprep.subr.mxu0 %v1250
          %1347 = vmatpush1.msra.mxu0 %v1249
          %1348 = vmatprep.subr.mxu0 %v1248
          %1349 = vmatpush1.msra.mxu0 %v1247
          %1350 = vmatprep.subr.mxu0 %v1310
          %1351 = vmatpush2.msra.mxu0 %v1309
          %1352 = vmatprep.subr.mxu0 %v1308
          %1353 = vmatpush2.msra.mxu0 %v1307
          %1354 = vmatprep.subr.mxu0 %v1306
          %1355 = vmatpush2.msra.mxu0 %v1305
          %1356 = vmatprep.subr.mxu0 %v1304
          %1357 = vmatpush2.msra.mxu0 %v1303
          %1358 = vmatprep.subr.mxu0 %v1302
          %1359 = vmatpush2.msra.mxu0 %v1301
          %1360 = vmatprep.subr.mxu0 %v1300
          %1361 = vmatpush2.msra.mxu0 %v1299
          %1362 = vmatprep.subr.mxu0 %v1298
          %1363 = vmatpush2.msra.mxu0 %v1297
          %1364 = vmatprep.subr.mxu0 %v1296
          %1365 = vmatpush2.msra.mxu0 %v1295
          %1366 = vmatprep.subr.mxu0 %v1294
          %1367 = vmatpush2.msra.mxu0 %v1293
          %1368 = vmatprep.subr.mxu0 %v1292
          %1369 = vmatpush2.msra.mxu0 %v1291
          %1370 = vmatprep.subr.mxu0 %v1290
          %1371 = vmatpush2.msra.mxu0 %v1289
          %1372 = vmatprep.subr.mxu0 %v1288
          %1373 = vmatpush2.msra.mxu0 %v1287
          %1374 = vmatprep.subr.mxu0 %v1286
          %1375 = vmatpush2.msra.mxu0 %v1285
          %1376 = vmatprep.subr.mxu0 %v1284
          %1377 = vmatpush2.msra.mxu0 %v1283
          %1378 = vmatprep.subr.mxu0 %v1282
          %1379 = vmatpush2.msra.mxu0 %v1281
          %1380 = vmatprep.subr.mxu0 %v1280
          %1381 = vmatpush2.msra.mxu0 %v1279
          %1382 = vmatprep.mubr.f32.mxu0 %v1316
          %1383 = vmatmul.mubr.f32.gmra.mxu0 %v1314
          %v1384 = vpop.f32.mrf.mxu0
          %v1385 = vadd.f32 0.0, %v1384
          %v1386 = vpop.f32.mrf.mxu0
          %v1387 = vadd.f32 0.0, %v1386
          %1388 = vdwg.mxu0
          %v1389 = vld [vmem:[%s4] sm:$0xff]
          %v1390 = vld [vmem:[%s4 + $0x8] sm:$0xff]
          %v1391 = vld [vmem:[%s4 + $0x10] sm:$0xff]
          %v1392 = vld [vmem:[%s4 + $0x18] sm:$0xff]
          %v1393 = vld [vmem:[%s4 + $0x20] sm:$0xff]
          %v1394 = vld [vmem:[%s4 + $0x28] sm:$0xff]
          %v1395 = vld [vmem:[%s4 + $0x30] sm:$0xff]
          %v1396 = vld [vmem:[%s4 + $0x38] sm:$0xff]
          %v1397 = vld [vmem:[%s4 + $0x40] sm:$0xff]
          %v1398 = vld [vmem:[%s4 + $0x48] sm:$0xff]
          %v1399 = vld [vmem:[%s4 + $0x50] sm:$0xff]
          %v1400 = vld [vmem:[%s4 + $0x58] sm:$0xff]
          %v1401 = vld [vmem:[%s4 + $0x60] sm:$0xff]
          %v1402 = vld [vmem:[%s4 + $0x68] sm:$0xff]
          %v1403 = vld [vmem:[%s4 + $0x70] sm:$0xff]
          %v1404 = vld [vmem:[%s4 + $0x78] sm:$0xff]
          %v1405 = vld [vmem:[%s4 + $0x80] sm:$0xff]
          %v1406 = vld [vmem:[%s4 + $0x88] sm:$0xff]
          %v1407 = vld [vmem:[%s4 + $0x90] sm:$0xff]
          %v1408 = vld [vmem:[%s4 + $0x98] sm:$0xff]
          %v1409 = vld [vmem:[%s4 + $0xa0] sm:$0xff]
          %v1410 = vld [vmem:[%s4 + $0xa8] sm:$0xff]
          %v1411 = vld [vmem:[%s4 + $0xb0] sm:$0xff]
          %v1412 = vld [vmem:[%s4 + $0xb8] sm:$0xff]
          %vm1413 = vcmask 523264
          %v1415 = vsel %vm1413, %v1387, 0
          %1417 = vmatprep.subr.mxu0 0.0
          %1418 = vmatpush1.msra.mxu0 %v1404
          %1419 = vmatprep.subr.mxu0 0.0
          %1420 = vmatpush1.msra.mxu0 %v1403
          %1421 = vmatprep.subr.mxu0 0.0
          %1422 = vmatpush1.msra.mxu0 %v1402
          %1423 = vmatprep.subr.mxu0 0.0
          %1424 = vmatpush1.msra.mxu0 %v1401
          %1425 = vmatprep.subr.mxu0 0.0
          %1426 = vmatpush1.msra.mxu0 %v1400
          %1427 = vmatprep.subr.mxu0 0.0
          %1428 = vmatpush1.msra.mxu0 %v1399
          %1429 = vmatprep.subr.mxu0 0.0
          %1430 = vmatpush1.msra.mxu0 %v1398
          %1431 = vmatprep.subr.mxu0 0.0
          %1432 = vmatpush1.msra.mxu0 %v1397
          %1433 = vmatprep.subr.mxu0 0.0
          %1434 = vmatpush1.msra.mxu0 %v1396
          %1435 = vmatprep.subr.mxu0 0.0
          %1436 = vmatpush1.msra.mxu0 %v1395
          %1437 = vmatprep.subr.mxu0 0.0
          %1438 = vmatpush1.msra.mxu0 %v1394
          %1439 = vmatprep.subr.mxu0 0.0
          %1440 = vmatpush1.msra.mxu0 %v1393
          %1441 = vmatprep.subr.mxu0 0.0
          %1442 = vmatpush1.msra.mxu0 %v1392
          %1443 = vmatprep.subr.mxu0 0.0
          %1444 = vmatpush1.msra.mxu0 %v1391
          %1445 = vmatprep.subr.mxu0 0.0
          %1446 = vmatpush1.msra.mxu0 %v1390
          %1447 = vmatprep.subr.mxu0 0.0
          %1448 = vmatpush1.msra.mxu0 %v1389
          %1449 = vmatprep.subr.mxu0 0.0
          %1450 = vmatpush2.msra.mxu0 0.0
          %1451 = vmatprep.subr.mxu0 0.0
          %1452 = vmatpush2.msra.mxu0 0.0
          %1453 = vmatprep.subr.mxu0 0.0
          %1454 = vmatpush2.msra.mxu0 0.0
          %1455 = vmatprep.subr.mxu0 0.0
          %1456 = vmatpush2.msra.mxu0 0.0
          %1457 = vmatprep.subr.mxu0 0.0
          %1458 = vmatpush2.msra.mxu0 0.0
          %1459 = vmatprep.subr.mxu0 0.0
          %1460 = vmatpush2.msra.mxu0 0.0
          %1461 = vmatprep.subr.mxu0 0.0
          %1462 = vmatpush2.msra.mxu0 0.0
          %1463 = vmatprep.subr.mxu0 0.0
          %1464 = vmatpush2.msra.mxu0 0.0
          %1465 = vmatprep.subr.mxu0 0.0
          %1466 = vmatpush2.msra.mxu0 %v1412
          %1467 = vmatprep.subr.mxu0 0.0
          %1468 = vmatpush2.msra.mxu0 %v1411
          %1469 = vmatprep.subr.mxu0 0.0
          %1470 = vmatpush2.msra.mxu0 %v1410
          %1471 = vmatprep.subr.mxu0 0.0
          %1472 = vmatpush2.msra.mxu0 %v1409
          %1473 = vmatprep.subr.mxu0 0.0
          %1474 = vmatpush2.msra.mxu0 %v1408
          %1475 = vmatprep.subr.mxu0 0.0
          %1476 = vmatpush2.msra.mxu0 %v1407
          %1477 = vmatprep.subr.mxu0 0.0
          %1478 = vmatpush2.msra.mxu0 %v1406
          %1479 = vmatprep.subr.mxu0 0.0
          %1480 = vmatpush2.msra.mxu0 %v1405
          %1481 = vmatprep.mubr.f32.mxu0 %v1415
          %1482 = vmatmul.mubr.f32.gmra.mxu0 %v1385
          %v1483 = vpop.f32.mrf.mxu0
          %v1484 = vadd.f32 0.0, %v1483
          %v1485 = vpop.f32.mrf.mxu0
          %1486 = vdwg.mxu0
          %s1487 = smul.u32 %s294, 4
          %s1488 = scalar_lea.vmem %s256, %s1487 [#allocation7]
          %1489 = vst [vmem:[%s1488] sm:$0xf] %v1484
        $region57: #{tpu_custom_call.1} parent=43 // loop_footer
          %s298 = sadd.s32 1, %s294
        $region58: #{tpu_custom_call.1} parent=43 // loop_footer_branch
          %293 = sbr.rel target = $region54
        $region59: #{tpu_custom_call.1} parent=43 // loop_exit
          _
        %s1490 = sand.u32 %s156, 1
        %s1491 = scalar_lea.sflag [#allocation3], %s1490
        %s1492 = sand.u32 %s156, 1
        %s1493 = smul.addr %s1492, 16
        %s1494 = scalar_lea.vmem [#allocation7], %s1493
        // Predicated region
        $region60: #{tpu_custom_call.1} parent=43 // pred_check
          %p1495 = pneg %p166
        $region61: #{tpu_custom_call.1} parent=43 // pred_check_branch
          %1497 = sbr.rel (%p1495) target = $region63
        $region62: #{tpu_custom_call.1} parent=43 // pred_region
          %s1498 = smul.u32 4, %s22
          %s1500 = ssub.s32 256, 256
          %1501 = vsyncadd %s1491, %s1500
          %s1502 = smul.addr %s1498, 64
          %s1503 = scalar_lea.hbm %s6, %s1502
          %s1504 = sshll.u32 %s1494, 4
          %s1505 = int_to_ptr.vmem [resolvable:$true] %s1504
          %1510 = dma.vmem_to_hbm [thread:$0]  %s1505, 256, %s1503, %s1491, 64, 64, 4
        $region63: #{tpu_custom_call.1} parent=43 // pred_fallthru
          _
      $region44: #{tpu_custom_call.1} parent=5 // pred_fallthru
        _
      %p1511 = scmp.le.s32.totalorder 2, %s17
      // Predicated region
      $region64: #{tpu_custom_call.1} parent=5 // pred_check
        %p1512 = pneg %p1511
      $region65: #{tpu_custom_call.1} parent=5 // pred_check_branch
        %1514 = sbr.rel (%p1512) target = $region67
      $region66: #{tpu_custom_call.1} parent=5 // pred_region
        %s1515 = ssub.s32 %s17, 2
        // Predicated region
        $region68: #{tpu_custom_call.1} parent=66 // pred_check
          %p1516 = pneg %p172
        $region69: #{tpu_custom_call.1} parent=66 // pred_check_branch
          %1518 = sbr.rel (%p1516) target = $region71
        $region70: #{tpu_custom_call.1} parent=66 // pred_region
          %s1519 = sand.u32 %s157, 1
          %s1520 = scalar_lea.sflag [#allocation3], %s1519
          %s1521 = sand.u32 %s157, 1
          %s1522 = smul.addr %s1521, 16
          %s1523 = scalar_lea.vmem [#allocation7], %s1522
          %1524 = dma.done %s1520, 256
        $region71: #{tpu_custom_call.1} parent=66 // pred_fallthru
          _
      $region67: #{tpu_custom_call.1} parent=5 // pred_fallthru
        _
    $region6: #{tpu_custom_call.1} parent=1 // loop_footer
      %s21 = sadd.s32 1, %s17
    $region7: #{tpu_custom_call.1} parent=1 // loop_footer_branch
      %16 = sbr.rel target = $region3
    $region8: #{tpu_custom_call.1} parent=1 // loop_exit
      _
    %1525 = vsyncpa [#allocation3], 1
    %s1526 = scalar_lea.sflag [#allocation3], 1
    %1527 = vsyncpa %s1526, 1
    %1528 = vsyncpa [#allocation4], 1
    %s1529 = scalar_lea.sflag [#allocation4], 1
    %1530 = vsyncpa %s1529, 1
    %1531 = vsyncpa [#allocation6], 1

</llo_original>
